<compile_context>
chip_gen: v7x
topology: tpu7x:2x2x1
jax: 0.10.0
libtpu: 0.0.40
codegen_flags: <defaults>
</compile_context>

<pallas_src>
import jax
import jax.numpy as jnp
from jax.experimental import pallas as pl
from jax.experimental.pallas import tpu as pltpu


def encoder_lstm_kernel(x_ref, w_emb_ref, b_emb_ref, w_ih_ref, w_hh_ref, b_ref,
                        out_ref, xp_ref):
    """Single-invocation EncoderLSTM forward.

    x_ref     : (T*N, 2)   f32   time-major flattened input positions
    w_emb_ref : (2, E)     f32   spatial_embedding weight (transposed)
    b_emb_ref : (1, E)     f32   spatial_embedding bias
    w_ih_ref  : (E, 4*Hp)  f32   LSTM W_ih^T, per-gate zero-padded H -> Hp
    w_hh_ref  : (Hp, 4*Hp) bf16  LSTM W_hh^T, per-gate zero-padded H -> Hp
    b_ref     : (1, 4*Hp)  f32   b_ih + b_hh, per-gate zero-padded
    out_ref   : (N, Hp)    f32   final hidden state (padded lanes are zero)
    xp_ref    : (T*N, 4*Hp) f32  VMEM scratch for the hoisted input projection
    """
    N, Hp = out_ref.shape
    TN = x_ref.shape[0]
    T = TN // N

    # ---- hoisted, time-independent input projection -------------------------
    # Spatial embedding on the VPU: K=2 would waste a full 128-deep MXU pass.
    x = x_ref[...]
    w_emb = w_emb_ref[...]
    emb = (x[:, 0:1] * w_emb[0:1, :] + x[:, 1:2] * w_emb[1:2, :]
           + b_emb_ref[...])
    emb = jnp.where(emb > 0, emb, 0.01 * emb)          # leaky_relu, slope 0.01
    # emb @ W_ih + (b_ih + b_hh) for all T timesteps in one shot (off the
    # recurrent critical path, kept in f32).
    xp_ref[...] = (jnp.dot(emb, w_ih_ref[...],
                           preferred_element_type=jnp.float32) + b_ref[...])

    # bf16 weights: 32 vregs — safe to keep resident across the unrolled loop
    # (the old f32 hoist was 64 vregs = the whole register file -> spills).
    w_hh = w_hh_ref[...]

    # ---- LSTM recurrence (PyTorch gate order: i, f, g, o) --------------------
    def step(t, carry):
        h, c = carry
        row = pl.multiple_of(t * N, N)                 # aligned, unmasked load
        # Recurrent matmul on the MXU bf16 path, f32 accumulation; everything
        # downstream (gates, c, h) stays f32.
        gates = xp_ref[pl.ds(row, N), :] + jnp.dot(
            h.astype(jnp.bfloat16), w_hh,
            preferred_element_type=jnp.float32)        # (N, 4*Hp) f32
        # sigmoid(x) = 0.5*(tanh(0.5*x)+1): single EUP push per gate instead
        # of exp + divide; mul/add land on idle VALU slots.
        i_g = 0.5 * (jnp.tanh(0.5 * gates[:, 0 * Hp:1 * Hp]) + 1.0)
        f_g = 0.5 * (jnp.tanh(0.5 * gates[:, 1 * Hp:2 * Hp]) + 1.0)
        g_g = jnp.tanh(gates[:, 2 * Hp:3 * Hp])
        o_g = 0.5 * (jnp.tanh(0.5 * gates[:, 3 * Hp:4 * Hp]) + 1.0)
        c_new = f_g * c + i_g * g_g
        h_new = o_g * jnp.tanh(c_new)
        # Padded lanes: gate preactivations are exactly 0 (zero-padded weight
        # columns + zero bias) -> i=f=o=0.5, g=0 -> c_new = h_new = 0, so the
        # padding never leaks into lanes [0, H).
        return (h_new, c_new)

    h0 = jnp.zeros((N, Hp), jnp.float32)
    c0 = jnp.zeros((N, Hp), jnp.float32)
    h, _ = jax.lax.fori_loop(0, T, step, (h0, c0), unroll=True)

    # final_h = state[0].view(npeds, h_dim)
    out_ref[...] = h


def _pad_gate_cols(w, H, Hp):
    """(rows, 4H) -> (rows, 4Hp): zero-pad each of the 4 gate blocks to Hp."""
    rows = w.shape[0]
    w4 = w.reshape(rows, 4, H)
    w4 = jnp.pad(w4, ((0, 0), (0, 0), (0, Hp - H)))
    return w4.reshape(rows, 4 * Hp)


def encoder_lstm(obs_traj, w_emb, b_emb, w_ih, w_hh, b):
    """obs_traj: (T, N, 2) f32. Returns final hidden state (N, H) f32."""
    T, N, _ = obs_traj.shape
    H = w_hh.shape[0]
    # Pad hidden dim so every gate occupies a full 128-lane vreg block, and
    # pad the ped dim to a multiple of 8 sublanes for aligned per-step slices.
    Hp = ((H + 127) // 128) * 128
    Np = ((N + 7) // 8) * 8

    # One-time parameter layout prep (in a real model this is done at init).
    w_ih_p = _pad_gate_cols(w_ih, H, Hp)                       # (E, 4Hp) f32
    b_p = _pad_gate_cols(b, H, Hp)                             # (1, 4Hp) f32
    w_hh_p = _pad_gate_cols(w_hh, H, Hp)                       # (H, 4Hp)
    w_hh_p = jnp.pad(w_hh_p, ((0, Hp - H), (0, 0)))            # (Hp, 4Hp)
    w_hh_p = w_hh_p.astype(jnp.bfloat16)                       # MXU bf16 path

    x = obs_traj
    if Np != N:
        x = jnp.pad(x, ((0, 0), (0, Np - N), (0, 0)))          # pad peds
    x_flat = x.reshape(T * Np, 2)                              # layout plumbing

    vmem = pltpu.MemorySpace.VMEM
    out_p = pl.pallas_call(
        encoder_lstm_kernel,
        out_shape=jax.ShapeDtypeStruct((Np, Hp), jnp.float32),
        in_specs=[
            pl.BlockSpec(memory_space=vmem),   # x (T*Np, 2)
            pl.BlockSpec(memory_space=vmem),   # W_emb^T
            pl.BlockSpec(memory_space=vmem),   # b_emb
            pl.BlockSpec(memory_space=vmem),   # W_ih^T (padded, f32)
            pl.BlockSpec(memory_space=vmem),   # W_hh^T (padded, bf16)
            pl.BlockSpec(memory_space=vmem),   # b_ih + b_hh (padded)
        ],
        out_specs=pl.BlockSpec(memory_space=vmem),
        scratch_shapes=[pltpu.VMEM((T * Np, 4 * Hp), jnp.float32)],  # x-proj
    )(x_flat, w_emb, b_emb, w_ih_p, w_hh_p, b_p)

    return out_p[:N, :H]


def reference(obs_traj, w_emb, b_emb, w_ih, w_hh, b):
    """Pure-JAX f32 reference (mirrors the PyTorch forward, unpadded)."""
    T, N, _ = obs_traj.shape
    H = w_hh.shape[0]
    emb = obs_traj.reshape(-1, 2) @ w_emb + b_emb
    emb = jnp.where(emb > 0, emb, 0.01 * emb).reshape(T, N, -1)

    def step(carry, x_t):
        h, c = carry
        gates = x_t @ w_ih + h @ w_hh + b
        i = jax.nn.sigmoid(gates[:, 0 * H:1 * H])
        f = jax.nn.sigmoid(gates[:, 1 * H:2 * H])
        g = jnp.tanh(gates[:, 2 * H:3 * H])
        o = jax.nn.sigmoid(gates[:, 3 * H:4 * H])
        c = f * c + i * g
        h = o * jnp.tanh(c)
        return (h, c), None

    init = (jnp.zeros((N, H), jnp.float32), jnp.zeros((N, H), jnp.float32))
    (h, _), _ = jax.lax.scan(step, init, emb)
    return h


if __name__ == "__main__":
    T, N = 8, 8            # seq_len, npeds
    E, H = 16, 64          # embedding_dim, h_dim (module defaults)

    key = jax.random.PRNGKey(0)
    kx, k1, k2, k3, k4, k5, k6 = jax.random.split(key, 7)

    obs_traj = jax.random.normal(kx, (T, N, 2), dtype=jnp.float32)

    # Deterministic synthetic parameters (PyTorch-style uniform ranges).
    lin_s = 1.0 / jnp.sqrt(2.0)
    lstm_s = 1.0 / jnp.sqrt(float(H))
    # spatial_embedding: weight (E, 2) -> stored transposed as (2, E)
    w_emb = jax.random.uniform(k1, (2, E), jnp.float32, -lin_s, lin_s)
    b_emb = jax.random.uniform(k2, (1, E), jnp.float32, -lin_s, lin_s)
    # LSTM: weight_ih (4H, E) / weight_hh (4H, H) -> stored transposed
    w_ih = jax.random.uniform(k3, (E, 4 * H), jnp.float32, -lstm_s, lstm_s)
    w_hh = jax.random.uniform(k4, (H, 4 * H), jnp.float32, -lstm_s, lstm_s)
    b_ih = jax.random.uniform(k5, (1, 4 * H), jnp.float32, -lstm_s, lstm_s)
    b_hh = jax.random.uniform(k6, (1, 4 * H), jnp.float32, -lstm_s, lstm_s)
    b = b_ih + b_hh

    out = encoder_lstm(obs_traj, w_emb, b_emb, w_ih, w_hh, b)
    out = jax.block_until_ready(out)

    ref = reference(obs_traj, w_emb, b_emb, w_ih, w_hh, b)
    assert out.shape == (N, H)
    # Tolerance relaxed vs. the pure-f32 reference: the recurrent matmul runs
    # with bf16 operands (f32 accumulation), and that rounding accumulates
    # over the T recurrent steps.
    assert jnp.allclose(out, ref, atol=5e-2, rtol=5e-2), "mismatch vs reference"

    print("KERNEL_OK")
</pallas_src>

<mosaic_0001>
module attributes {stable_mosaic.version = 11 : i64} {
  func.func @encoder_lstm_kernel(%arg0: memref<64x2xf32, #tpu.memory_space<vmem>>, %arg1: memref<2x16xf32, #tpu.memory_space<vmem>>, %arg2: memref<1x16xf32, #tpu.memory_space<vmem>>, %arg3: memref<16x512xf32, #tpu.memory_space<vmem>>, %arg4: memref<128x512xbf16, #tpu.memory_space<vmem>>, %arg5: memref<1x512xf32, #tpu.memory_space<vmem>>, %arg6: memref<8x128xf32, #tpu.memory_space<vmem>>, %arg7: memref<64x512xf32, #tpu.memory_space<vmem>>) attributes {dimension_semantics = [], scalar_prefetch = 0 : i64, scratch_operands = 1 : i64, tpu.core_type = #tpu.core_type<tc>} {
    %c0 = arith.constant 0 : index
    %c0_0 = arith.constant 0 : index
    %0 = vector.load %arg0[%c0, %c0_0] : memref<64x2xf32, #tpu.memory_space<vmem>>, vector<64x2xf32>
    %c0_1 = arith.constant 0 : index
    %c0_2 = arith.constant 0 : index
    %1 = vector.load %arg1[%c0_1, %c0_2] : memref<2x16xf32, #tpu.memory_space<vmem>>, vector<2x16xf32>
    %2 = vector.extract_strided_slice %0 {offsets = [0, 0], sizes = [64, 1], strides = [1, 1]} : vector<64x2xf32> to vector<64x1xf32>
    %3 = vector.extract_strided_slice %1 {offsets = [0, 0], sizes = [1, 16], strides = [1, 1]} : vector<2x16xf32> to vector<1x16xf32>
    %4 = vector.broadcast %2 : vector<64x1xf32> to vector<64x16xf32>
    %5 = vector.broadcast %3 : vector<1x16xf32> to vector<64x16xf32>
    %6 = arith.mulf %4, %5 : vector<64x16xf32>
    %7 = vector.extract_strided_slice %0 {offsets = [0, 1], sizes = [64, 1], strides = [1, 1]} : vector<64x2xf32> to vector<64x1xf32>
    %8 = vector.extract_strided_slice %1 {offsets = [1, 0], sizes = [1, 16], strides = [1, 1]} : vector<2x16xf32> to vector<1x16xf32>
    %9 = vector.broadcast %7 : vector<64x1xf32> to vector<64x16xf32>
    %10 = vector.broadcast %8 : vector<1x16xf32> to vector<64x16xf32>
    %11 = arith.mulf %9, %10 : vector<64x16xf32>
    %12 = arith.addf %6, %11 : vector<64x16xf32>
    %c0_3 = arith.constant 0 : index
    %c0_4 = arith.constant 0 : index
    %13 = vector.load %arg2[%c0_3, %c0_4] : memref<1x16xf32, #tpu.memory_space<vmem>>, vector<1x16xf32>
    %14 = vector.broadcast %13 : vector<1x16xf32> to vector<64x16xf32>
    %15 = arith.addf %12, %14 : vector<64x16xf32>
    %cst = arith.constant 0.000000e+00 : f32
    %16 = vector.broadcast %cst : f32 to vector<64x16xf32>
    %17 = arith.cmpf ogt, %15, %16 : vector<64x16xf32>
    %cst_5 = arith.constant 0.00999999977 : f32
    %18 = vector.broadcast %cst_5 : f32 to vector<64x16xf32>
    %19 = arith.mulf %18, %15 : vector<64x16xf32>
    %20 = arith.select %17, %15, %19 : vector<64x16xi1>, vector<64x16xf32>
    %c0_6 = arith.constant 0 : index
    %c0_7 = arith.constant 0 : index
    %21 = vector.load %arg3[%c0_6, %c0_7] : memref<16x512xf32, #tpu.memory_space<vmem>>, vector<16x512xf32>
    %cst_8 = arith.constant dense<0.000000e+00> : vector<64x512xf32>
    %22 = tpu.matmul %20, %21, %cst_8 {dimension_numbers = #tpu.dot_dimension_numbers<[1], [0], [0], [1], [0, 0, 1, 1], [], []>} : vector<64x16xf32>, vector<16x512xf32>, vector<64x512xf32> -> vector<64x512xf32>
    %c0_9 = arith.constant 0 : index
    %c0_10 = arith.constant 0 : index
    %23 = vector.load %arg5[%c0_9, %c0_10] : memref<1x512xf32, #tpu.memory_space<vmem>>, vector<1x512xf32>
    %24 = vector.broadcast %23 : vector<1x512xf32> to vector<64x512xf32>
    %25 = arith.addf %22, %24 : vector<64x512xf32>
    %c0_11 = arith.constant 0 : index
    %c0_12 = arith.constant 0 : index
    %26 = vector.load %arg7[%c0_11, %c0_12] : memref<64x512xf32, #tpu.memory_space<vmem>>, vector<64x512xf32>
    tpu.vector_store %arg7[%c0_11, %c0_12], %25 {strides = array<i32>} : memref<64x512xf32, #tpu.memory_space<vmem>>, vector<64x512xf32>,
    %c0_13 = arith.constant 0 : index
    %c0_14 = arith.constant 0 : index
    %27 = vector.load %arg4[%c0_13, %c0_14] : memref<128x512xbf16, #tpu.memory_space<vmem>>, vector<128x512xbf16>
    %cst_15 = arith.constant 0.000000e+00 : f32
    %28 = vector.broadcast %cst_15 : f32 to vector<8x128xf32>
    %cst_16 = arith.constant 0.000000e+00 : f32
    %29 = vector.broadcast %cst_16 : f32 to vector<8x128xf32>
    %c0_i32 = arith.constant 0 : i32
    %c8_i32 = arith.constant 8 : i32
    %30 = arith.muli %c0_i32, %c8_i32 : i32
    %31 = tpu.assume_multiple %30, 8 : i32
    %32 = arith.index_cast %31 : i32 to index
    %c0_17 = arith.constant 0 : index
    %33 = vector.load %arg7[%32, %c0_17] : memref<64x512xf32, #tpu.memory_space<vmem>>, vector<8x512xf32>
    %34 = arith.truncf %28 : vector<8x128xf32> to vector<8x128xbf16>
    %cst_18 = arith.constant dense<0.000000e+00> : vector<8x512xf32>
    %35 = tpu.matmul %34, %27, %cst_18 {dimension_numbers = #tpu.dot_dimension_numbers<[1], [0], [0], [1], [0, 0, 1, 1], [], []>} : vector<8x128xbf16>, vector<128x512xbf16>, vector<8x512xf32> -> vector<8x512xf32>
    %36 = arith.addf %33, %35 : vector<8x512xf32>
    %37 = vector.extract_strided_slice %36 {offsets = [0, 0], sizes = [8, 128], strides = [1, 1]} : vector<8x512xf32> to vector<8x128xf32>
    %cst_19 = arith.constant 5.000000e-01 : f32
    %38 = vector.broadcast %cst_19 : f32 to vector<8x128xf32>
    %39 = arith.mulf %38, %37 : vector<8x128xf32>
    %40 = math.tanh %39 : vector<8x128xf32>
    %cst_20 = arith.constant 1.000000e+00 : f32
    %41 = vector.broadcast %cst_20 : f32 to vector<8x128xf32>
    %42 = arith.addf %40, %41 : vector<8x128xf32>
    %cst_21 = arith.constant 5.000000e-01 : f32
    %43 = vector.broadcast %cst_21 : f32 to vector<8x128xf32>
    %44 = arith.mulf %43, %42 : vector<8x128xf32>
    %45 = vector.extract_strided_slice %36 {offsets = [0, 128], sizes = [8, 128], strides = [1, 1]} : vector<8x512xf32> to vector<8x128xf32>
    %cst_22 = arith.constant 5.000000e-01 : f32
    %46 = vector.broadcast %cst_22 : f32 to vector<8x128xf32>
    %47 = arith.mulf %46, %45 : vector<8x128xf32>
    %48 = math.tanh %47 : vector<8x128xf32>
    %cst_23 = arith.constant 1.000000e+00 : f32
    %49 = vector.broadcast %cst_23 : f32 to vector<8x128xf32>
    %50 = arith.addf %48, %49 : vector<8x128xf32>
    %cst_24 = arith.constant 5.000000e-01 : f32
    %51 = vector.broadcast %cst_24 : f32 to vector<8x128xf32>
    %52 = arith.mulf %51, %50 : vector<8x128xf32>
    %53 = vector.extract_strided_slice %36 {offsets = [0, 256], sizes = [8, 128], strides = [1, 1]} : vector<8x512xf32> to vector<8x128xf32>
    %54 = math.tanh %53 : vector<8x128xf32>
    %55 = vector.extract_strided_slice %36 {offsets = [0, 384], sizes = [8, 128], strides = [1, 1]} : vector<8x512xf32> to vector<8x128xf32>
    %cst_25 = arith.constant 5.000000e-01 : f32
    %56 = vector.broadcast %cst_25 : f32 to vector<8x128xf32>
    %57 = arith.mulf %56, %55 : vector<8x128xf32>
    %58 = math.tanh %57 : vector<8x128xf32>
    %cst_26 = arith.constant 1.000000e+00 : f32
    %59 = vector.broadcast %cst_26 : f32 to vector<8x128xf32>
    %60 = arith.addf %58, %59 : vector<8x128xf32>
    %cst_27 = arith.constant 5.000000e-01 : f32
    %61 = vector.broadcast %cst_27 : f32 to vector<8x128xf32>
    %62 = arith.mulf %61, %60 : vector<8x128xf32>
    %63 = arith.mulf %52, %29 : vector<8x128xf32>
    %64 = arith.mulf %44, %54 : vector<8x128xf32>
    %65 = arith.addf %63, %64 : vector<8x128xf32>
    %66 = math.tanh %65 : vector<8x128xf32>
    %67 = arith.mulf %62, %66 : vector<8x128xf32>
    %c1_i32 = arith.constant 1 : i32
    %c8_i32_28 = arith.constant 8 : i32
    %68 = arith.muli %c1_i32, %c8_i32_28 : i32
    %69 = tpu.assume_multiple %68, 8 : i32
    %70 = arith.index_cast %69 : i32 to index
    %c0_29 = arith.constant 0 : index
    %71 = vector.load %arg7[%70, %c0_29] : memref<64x512xf32, #tpu.memory_space<vmem>>, vector<8x512xf32>
    %72 = arith.truncf %67 : vector<8x128xf32> to vector<8x128xbf16>
    %cst_30 = arith.constant dense<0.000000e+00> : vector<8x512xf32>
    %73 = tpu.matmul %72, %27, %cst_30 {dimension_numbers = #tpu.dot_dimension_numbers<[1], [0], [0], [1], [0, 0, 1, 1], [], []>} : vector<8x128xbf16>, vector<128x512xbf16>, vector<8x512xf32> -> vector<8x512xf32>
    %74 = arith.addf %71, %73 : vector<8x512xf32>
    %75 = vector.extract_strided_slice %74 {offsets = [0, 0], sizes = [8, 128], strides = [1, 1]} : vector<8x512xf32> to vector<8x128xf32>
    %cst_31 = arith.constant 5.000000e-01 : f32
    %76 = vector.broadcast %cst_31 : f32 to vector<8x128xf32>
    %77 = arith.mulf %76, %75 : vector<8x128xf32>
    %78 = math.tanh %77 : vector<8x128xf32>
    %cst_32 = arith.constant 1.000000e+00 : f32
    %79 = vector.broadcast %cst_32 : f32 to vector<8x128xf32>
    %80 = arith.addf %78, %79 : vector<8x128xf32>
    %cst_33 = arith.constant 5.000000e-01 : f32
    %81 = vector.broadcast %cst_33 : f32 to vector<8x128xf32>
    %82 = arith.mulf %81, %80 : vector<8x128xf32>
    %83 = vector.extract_strided_slice %74 {offsets = [0, 128], sizes = [8, 128], strides = [1, 1]} : vector<8x512xf32> to vector<8x128xf32>
    %cst_34 = arith.constant 5.000000e-01 : f32
    %84 = vector.broadcast %cst_34 : f32 to vector<8x128xf32>
    %85 = arith.mulf %84, %83 : vector<8x128xf32>
    %86 = math.tanh %85 : vector<8x128xf32>
    %cst_35 = arith.constant 1.000000e+00 : f32
    %87 = vector.broadcast %cst_35 : f32 to vector<8x128xf32>
    %88 = arith.addf %86, %87 : vector<8x128xf32>
    %cst_36 = arith.constant 5.000000e-01 : f32
    %89 = vector.broadcast %cst_36 : f32 to vector<8x128xf32>
    %90 = arith.mulf %89, %88 : vector<8x128xf32>
    %91 = vector.extract_strided_slice %74 {offsets = [0, 256], sizes = [8, 128], strides = [1, 1]} : vector<8x512xf32> to vector<8x128xf32>
    %92 = math.tanh %91 : vector<8x128xf32>
    %93 = vector.extract_strided_slice %74 {offsets = [0, 384], sizes = [8, 128], strides = [1, 1]} : vector<8x512xf32> to vector<8x128xf32>
    %cst_37 = arith.constant 5.000000e-01 : f32
    %94 = vector.broadcast %cst_37 : f32 to vector<8x128xf32>
    %95 = arith.mulf %94, %93 : vector<8x128xf32>
    %96 = math.tanh %95 : vector<8x128xf32>
    %cst_38 = arith.constant 1.000000e+00 : f32
    %97 = vector.broadcast %cst_38 : f32 to vector<8x128xf32>
    %98 = arith.addf %96, %97 : vector<8x128xf32>
    %cst_39 = arith.constant 5.000000e-01 : f32
    %99 = vector.broadcast %cst_39 : f32 to vector<8x128xf32>
    %100 = arith.mulf %99, %98 : vector<8x128xf32>
    %101 = arith.mulf %90, %65 : vector<8x128xf32>
    %102 = arith.mulf %82, %92 : vector<8x128xf32>
    %103 = arith.addf %101, %102 : vector<8x128xf32>
    %104 = math.tanh %103 : vector<8x128xf32>
    %105 = arith.mulf %100, %104 : vector<8x128xf32>
    %c2_i32 = arith.constant 2 : i32
    %c8_i32_40 = arith.constant 8 : i32
    %106 = arith.muli %c2_i32, %c8_i32_40 : i32
    %107 = tpu.assume_multiple %106, 8 : i32
    %108 = arith.index_cast %107 : i32 to index
    %c0_41 = arith.constant 0 : index
    %109 = vector.load %arg7[%108, %c0_41] : memref<64x512xf32, #tpu.memory_space<vmem>>, vector<8x512xf32>
    %110 = arith.truncf %105 : vector<8x128xf32> to vector<8x128xbf16>
    %cst_42 = arith.constant dense<0.000000e+00> : vector<8x512xf32>
    %111 = tpu.matmul %110, %27, %cst_42 {dimension_numbers = #tpu.dot_dimension_numbers<[1], [0], [0], [1], [0, 0, 1, 1], [], []>} : vector<8x128xbf16>, vector<128x512xbf16>, vector<8x512xf32> -> vector<8x512xf32>
    %112 = arith.addf %109, %111 : vector<8x512xf32>
    %113 = vector.extract_strided_slice %112 {offsets = [0, 0], sizes = [8, 128], strides = [1, 1]} : vector<8x512xf32> to vector<8x128xf32>
    %cst_43 = arith.constant 5.000000e-01 : f32
    %114 = vector.broadcast %cst_43 : f32 to vector<8x128xf32>
    %115 = arith.mulf %114, %113 : vector<8x128xf32>
    %116 = math.tanh %115 : vector<8x128xf32>
    %cst_44 = arith.constant 1.000000e+00 : f32
    %117 = vector.broadcast %cst_44 : f32 to vector<8x128xf32>
    %118 = arith.addf %116, %117 : vector<8x128xf32>
    %cst_45 = arith.constant 5.000000e-01 : f32
    %119 = vector.broadcast %cst_45 : f32 to vector<8x128xf32>
    %120 = arith.mulf %119, %118 : vector<8x128xf32>
    %121 = vector.extract_strided_slice %112 {offsets = [0, 128], sizes = [8, 128], strides = [1, 1]} : vector<8x512xf32> to vector<8x128xf32>
    %cst_46 = arith.constant 5.000000e-01 : f32
    %122 = vector.broadcast %cst_46 : f32 to vector<8x128xf32>
    %123 = arith.mulf %122, %121 : vector<8x128xf32>
    %124 = math.tanh %123 : vector<8x128xf32>
    %cst_47 = arith.constant 1.000000e+00 : f32
    %125 = vector.broadcast %cst_47 : f32 to vector<8x128xf32>
    %126 = arith.addf %124, %125 : vector<8x128xf32>
    %cst_48 = arith.constant 5.000000e-01 : f32
    %127 = vector.broadcast %cst_48 : f32 to vector<8x128xf32>
    %128 = arith.mulf %127, %126 : vector<8x128xf32>
    %129 = vector.extract_strided_slice %112 {offsets = [0, 256], sizes = [8, 128], strides = [1, 1]} : vector<8x512xf32> to vector<8x128xf32>
    %130 = math.tanh %129 : vector<8x128xf32>
    %131 = vector.extract_strided_slice %112 {offsets = [0, 384], sizes = [8, 128], strides = [1, 1]} : vector<8x512xf32> to vector<8x128xf32>
    %cst_49 = arith.constant 5.000000e-01 : f32
    %132 = vector.broadcast %cst_49 : f32 to vector<8x128xf32>
    %133 = arith.mulf %132, %131 : vector<8x128xf32>
    %134 = math.tanh %133 : vector<8x128xf32>
    %cst_50 = arith.constant 1.000000e+00 : f32
    %135 = vector.broadcast %cst_50 : f32 to vector<8x128xf32>
    %136 = arith.addf %134, %135 : vector<8x128xf32>
    %cst_51 = arith.constant 5.000000e-01 : f32
    %137 = vector.broadcast %cst_51 : f32 to vector<8x128xf32>
    %138 = arith.mulf %137, %136 : vector<8x128xf32>
    %139 = arith.mulf %128, %103 : vector<8x128xf32>
    %140 = arith.mulf %120, %130 : vector<8x128xf32>
    %141 = arith.addf %139, %140 : vector<8x128xf32>
    %142 = math.tanh %141 : vector<8x128xf32>
    %143 = arith.mulf %138, %142 : vector<8x128xf32>
    %c3_i32 = arith.constant 3 : i32
    %c8_i32_52 = arith.constant 8 : i32
    %144 = arith.muli %c3_i32, %c8_i32_52 : i32
    %145 = tpu.assume_multiple %144, 8 : i32
    %146 = arith.index_cast %145 : i32 to index
    %c0_53 = arith.constant 0 : index
    %147 = vector.load %arg7[%146, %c0_53] : memref<64x512xf32, #tpu.memory_space<vmem>>, vector<8x512xf32>
    %148 = arith.truncf %143 : vector<8x128xf32> to vector<8x128xbf16>
    %cst_54 = arith.constant dense<0.000000e+00> : vector<8x512xf32>
    %149 = tpu.matmul %148, %27, %cst_54 {dimension_numbers = #tpu.dot_dimension_numbers<[1], [0], [0], [1], [0, 0, 1, 1], [], []>} : vector<8x128xbf16>, vector<128x512xbf16>, vector<8x512xf32> -> vector<8x512xf32>
    %150 = arith.addf %147, %149 : vector<8x512xf32>
    %151 = vector.extract_strided_slice %150 {offsets = [0, 0], sizes = [8, 128], strides = [1, 1]} : vector<8x512xf32> to vector<8x128xf32>
    %cst_55 = arith.constant 5.000000e-01 : f32
    %152 = vector.broadcast %cst_55 : f32 to vector<8x128xf32>
    %153 = arith.mulf %152, %151 : vector<8x128xf32>
    %154 = math.tanh %153 : vector<8x128xf32>
    %cst_56 = arith.constant 1.000000e+00 : f32
    %155 = vector.broadcast %cst_56 : f32 to vector<8x128xf32>
    %156 = arith.addf %154, %155 : vector<8x128xf32>
    %cst_57 = arith.constant 5.000000e-01 : f32
    %157 = vector.broadcast %cst_57 : f32 to vector<8x128xf32>
    %158 = arith.mulf %157, %156 : vector<8x128xf32>
    %159 = vector.extract_strided_slice %150 {offsets = [0, 128], sizes = [8, 128], strides = [1, 1]} : vector<8x512xf32> to vector<8x128xf32>
    %cst_58 = arith.constant 5.000000e-01 : f32
    %160 = vector.broadcast %cst_58 : f32 to vector<8x128xf32>
    %161 = arith.mulf %160, %159 : vector<8x128xf32>
    %162 = math.tanh %161 : vector<8x128xf32>
    %cst_59 = arith.constant 1.000000e+00 : f32
    %163 = vector.broadcast %cst_59 : f32 to vector<8x128xf32>
    %164 = arith.addf %162, %163 : vector<8x128xf32>
    %cst_60 = arith.constant 5.000000e-01 : f32
    %165 = vector.broadcast %cst_60 : f32 to vector<8x128xf32>
    %166 = arith.mulf %165, %164 : vector<8x128xf32>
    %167 = vector.extract_strided_slice %150 {offsets = [0, 256], sizes = [8, 128], strides = [1, 1]} : vector<8x512xf32> to vector<8x128xf32>
    %168 = math.tanh %167 : vector<8x128xf32>
    %169 = vector.extract_strided_slice %150 {offsets = [0, 384], sizes = [8, 128], strides = [1, 1]} : vector<8x512xf32> to vector<8x128xf32>
    %cst_61 = arith.constant 5.000000e-01 : f32
    %170 = vector.broadcast %cst_61 : f32 to vector<8x128xf32>
    %171 = arith.mulf %170, %169 : vector<8x128xf32>
    %172 = math.tanh %171 : vector<8x128xf32>
    %cst_62 = arith.constant 1.000000e+00 : f32
    %173 = vector.broadcast %cst_62 : f32 to vector<8x128xf32>
    %174 = arith.addf %172, %173 : vector<8x128xf32>
    %cst_63 = arith.constant 5.000000e-01 : f32
    %175 = vector.broadcast %cst_63 : f32 to vector<8x128xf32>
    %176 = arith.mulf %175, %174 : vector<8x128xf32>
    %177 = arith.mulf %166, %141 : vector<8x128xf32>
    %178 = arith.mulf %158, %168 : vector<8x128xf32>
    %179 = arith.addf %177, %178 : vector<8x128xf32>
    %180 = math.tanh %179 : vector<8x128xf32>
    %181 = arith.mulf %176, %180 : vector<8x128xf32>
    %c4_i32 = arith.constant 4 : i32
    %c8_i32_64 = arith.constant 8 : i32
    %182 = arith.muli %c4_i32, %c8_i32_64 : i32
    %183 = tpu.assume_multiple %182, 8 : i32
    %184 = arith.index_cast %183 : i32 to index
    %c0_65 = arith.constant 0 : index
    %185 = vector.load %arg7[%184, %c0_65] : memref<64x512xf32, #tpu.memory_space<vmem>>, vector<8x512xf32>
    %186 = arith.truncf %181 : vector<8x128xf32> to vector<8x128xbf16>
    %cst_66 = arith.constant dense<0.000000e+00> : vector<8x512xf32>
    %187 = tpu.matmul %186, %27, %cst_66 {dimension_numbers = #tpu.dot_dimension_numbers<[1], [0], [0], [1], [0, 0, 1, 1], [], []>} : vector<8x128xbf16>, vector<128x512xbf16>, vector<8x512xf32> -> vector<8x512xf32>
    %188 = arith.addf %185, %187 : vector<8x512xf32>
    %189 = vector.extract_strided_slice %188 {offsets = [0, 0], sizes = [8, 128], strides = [1, 1]} : vector<8x512xf32> to vector<8x128xf32>
    %cst_67 = arith.constant 5.000000e-01 : f32
    %190 = vector.broadcast %cst_67 : f32 to vector<8x128xf32>
    %191 = arith.mulf %190, %189 : vector<8x128xf32>
    %192 = math.tanh %191 : vector<8x128xf32>
    %cst_68 = arith.constant 1.000000e+00 : f32
    %193 = vector.broadcast %cst_68 : f32 to vector<8x128xf32>
    %194 = arith.addf %192, %193 : vector<8x128xf32>
    %cst_69 = arith.constant 5.000000e-01 : f32
    %195 = vector.broadcast %cst_69 : f32 to vector<8x128xf32>
    %196 = arith.mulf %195, %194 : vector<8x128xf32>
    %197 = vector.extract_strided_slice %188 {offsets = [0, 128], sizes = [8, 128], strides = [1, 1]} : vector<8x512xf32> to vector<8x128xf32>
    %cst_70 = arith.constant 5.000000e-01 : f32
    %198 = vector.broadcast %cst_70 : f32 to vector<8x128xf32>
    %199 = arith.mulf %198, %197 : vector<8x128xf32>
    %200 = math.tanh %199 : vector<8x128xf32>
    %cst_71 = arith.constant 1.000000e+00 : f32
    %201 = vector.broadcast %cst_71 : f32 to vector<8x128xf32>
    %202 = arith.addf %200, %201 : vector<8x128xf32>
    %cst_72 = arith.constant 5.000000e-01 : f32
    %203 = vector.broadcast %cst_72 : f32 to vector<8x128xf32>
    %204 = arith.mulf %203, %202 : vector<8x128xf32>
    %205 = vector.extract_strided_slice %188 {offsets = [0, 256], sizes = [8, 128], strides = [1, 1]} : vector<8x512xf32> to vector<8x128xf32>
    %206 = math.tanh %205 : vector<8x128xf32>
    %207 = vector.extract_strided_slice %188 {offsets = [0, 384], sizes = [8, 128], strides = [1, 1]} : vector<8x512xf32> to vector<8x128xf32>
    %cst_73 = arith.constant 5.000000e-01 : f32
    %208 = vector.broadcast %cst_73 : f32 to vector<8x128xf32>
    %209 = arith.mulf %208, %207 : vector<8x128xf32>
    %210 = math.tanh %209 : vector<8x128xf32>
    %cst_74 = arith.constant 1.000000e+00 : f32
    %211 = vector.broadcast %cst_74 : f32 to vector<8x128xf32>
    %212 = arith.addf %210, %211 : vector<8x128xf32>
    %cst_75 = arith.constant 5.000000e-01 : f32
    %213 = vector.broadcast %cst_75 : f32 to vector<8x128xf32>
    %214 = arith.mulf %213, %212 : vector<8x128xf32>
    %215 = arith.mulf %204, %179 : vector<8x128xf32>
    %216 = arith.mulf %196, %206 : vector<8x128xf32>
    %217 = arith.addf %215, %216 : vector<8x128xf32>
    %218 = math.tanh %217 : vector<8x128xf32>
    %219 = arith.mulf %214, %218 : vector<8x128xf32>
    %c5_i32 = arith.constant 5 : i32
    %c8_i32_76 = arith.constant 8 : i32
    %220 = arith.muli %c5_i32, %c8_i32_76 : i32
    %221 = tpu.assume_multiple %220, 8 : i32
    %222 = arith.index_cast %221 : i32 to index
    %c0_77 = arith.constant 0 : index
    %223 = vector.load %arg7[%222, %c0_77] : memref<64x512xf32, #tpu.memory_space<vmem>>, vector<8x512xf32>
    %224 = arith.truncf %219 : vector<8x128xf32> to vector<8x128xbf16>
    %cst_78 = arith.constant dense<0.000000e+00> : vector<8x512xf32>
    %225 = tpu.matmul %224, %27, %cst_78 {dimension_numbers = #tpu.dot_dimension_numbers<[1], [0], [0], [1], [0, 0, 1, 1], [], []>} : vector<8x128xbf16>, vector<128x512xbf16>, vector<8x512xf32> -> vector<8x512xf32>
    %226 = arith.addf %223, %225 : vector<8x512xf32>
    %227 = vector.extract_strided_slice %226 {offsets = [0, 0], sizes = [8, 128], strides = [1, 1]} : vector<8x512xf32> to vector<8x128xf32>
    %cst_79 = arith.constant 5.000000e-01 : f32
    %228 = vector.broadcast %cst_79 : f32 to vector<8x128xf32>
    %229 = arith.mulf %228, %227 : vector<8x128xf32>
    %230 = math.tanh %229 : vector<8x128xf32>
    %cst_80 = arith.constant 1.000000e+00 : f32
    %231 = vector.broadcast %cst_80 : f32 to vector<8x128xf32>
    %232 = arith.addf %230, %231 : vector<8x128xf32>
    %cst_81 = arith.constant 5.000000e-01 : f32
    %233 = vector.broadcast %cst_81 : f32 to vector<8x128xf32>
    %234 = arith.mulf %233, %232 : vector<8x128xf32>
    %235 = vector.extract_strided_slice %226 {offsets = [0, 128], sizes = [8, 128], strides = [1, 1]} : vector<8x512xf32> to vector<8x128xf32>
    %cst_82 = arith.constant 5.000000e-01 : f32
    %236 = vector.broadcast %cst_82 : f32 to vector<8x128xf32>
    %237 = arith.mulf %236, %235 : vector<8x128xf32>
    %238 = math.tanh %237 : vector<8x128xf32>
    %cst_83 = arith.constant 1.000000e+00 : f32
    %239 = vector.broadcast %cst_83 : f32 to vector<8x128xf32>
    %240 = arith.addf %238, %239 : vector<8x128xf32>
    %cst_84 = arith.constant 5.000000e-01 : f32
    %241 = vector.broadcast %cst_84 : f32 to vector<8x128xf32>
    %242 = arith.mulf %241, %240 : vector<8x128xf32>
    %243 = vector.extract_strided_slice %226 {offsets = [0, 256], sizes = [8, 128], strides = [1, 1]} : vector<8x512xf32> to vector<8x128xf32>
    %244 = math.tanh %243 : vector<8x128xf32>
    %245 = vector.extract_strided_slice %226 {offsets = [0, 384], sizes = [8, 128], strides = [1, 1]} : vector<8x512xf32> to vector<8x128xf32>
    %cst_85 = arith.constant 5.000000e-01 : f32
    %246 = vector.broadcast %cst_85 : f32 to vector<8x128xf32>
    %247 = arith.mulf %246, %245 : vector<8x128xf32>
    %248 = math.tanh %247 : vector<8x128xf32>
    %cst_86 = arith.constant 1.000000e+00 : f32
    %249 = vector.broadcast %cst_86 : f32 to vector<8x128xf32>
    %250 = arith.addf %248, %249 : vector<8x128xf32>
    %cst_87 = arith.constant 5.000000e-01 : f32
    %251 = vector.broadcast %cst_87 : f32 to vector<8x128xf32>
    %252 = arith.mulf %251, %250 : vector<8x128xf32>
    %253 = arith.mulf %242, %217 : vector<8x128xf32>
    %254 = arith.mulf %234, %244 : vector<8x128xf32>
    %255 = arith.addf %253, %254 : vector<8x128xf32>
    %256 = math.tanh %255 : vector<8x128xf32>
    %257 = arith.mulf %252, %256 : vector<8x128xf32>
    %c6_i32 = arith.constant 6 : i32
    %c8_i32_88 = arith.constant 8 : i32
    %258 = arith.muli %c6_i32, %c8_i32_88 : i32
    %259 = tpu.assume_multiple %258, 8 : i32
    %260 = arith.index_cast %259 : i32 to index
    %c0_89 = arith.constant 0 : index
    %261 = vector.load %arg7[%260, %c0_89] : memref<64x512xf32, #tpu.memory_space<vmem>>, vector<8x512xf32>
    %262 = arith.truncf %257 : vector<8x128xf32> to vector<8x128xbf16>
    %cst_90 = arith.constant dense<0.000000e+00> : vector<8x512xf32>
    %263 = tpu.matmul %262, %27, %cst_90 {dimension_numbers = #tpu.dot_dimension_numbers<[1], [0], [0], [1], [0, 0, 1, 1], [], []>} : vector<8x128xbf16>, vector<128x512xbf16>, vector<8x512xf32> -> vector<8x512xf32>
    %264 = arith.addf %261, %263 : vector<8x512xf32>
    %265 = vector.extract_strided_slice %264 {offsets = [0, 0], sizes = [8, 128], strides = [1, 1]} : vector<8x512xf32> to vector<8x128xf32>
    %cst_91 = arith.constant 5.000000e-01 : f32
    %266 = vector.broadcast %cst_91 : f32 to vector<8x128xf32>
    %267 = arith.mulf %266, %265 : vector<8x128xf32>
    %268 = math.tanh %267 : vector<8x128xf32>
    %cst_92 = arith.constant 1.000000e+00 : f32
    %269 = vector.broadcast %cst_92 : f32 to vector<8x128xf32>
    %270 = arith.addf %268, %269 : vector<8x128xf32>
    %cst_93 = arith.constant 5.000000e-01 : f32
    %271 = vector.broadcast %cst_93 : f32 to vector<8x128xf32>
    %272 = arith.mulf %271, %270 : vector<8x128xf32>
    %273 = vector.extract_strided_slice %264 {offsets = [0, 128], sizes = [8, 128], strides = [1, 1]} : vector<8x512xf32> to vector<8x128xf32>
    %cst_94 = arith.constant 5.000000e-01 : f32
    %274 = vector.broadcast %cst_94 : f32 to vector<8x128xf32>
    %275 = arith.mulf %274, %273 : vector<8x128xf32>
    %276 = math.tanh %275 : vector<8x128xf32>
    %cst_95 = arith.constant 1.000000e+00 : f32
    %277 = vector.broadcast %cst_95 : f32 to vector<8x128xf32>
    %278 = arith.addf %276, %277 : vector<8x128xf32>
    %cst_96 = arith.constant 5.000000e-01 : f32
    %279 = vector.broadcast %cst_96 : f32 to vector<8x128xf32>
    %280 = arith.mulf %279, %278 : vector<8x128xf32>
    %281 = vector.extract_strided_slice %264 {offsets = [0, 256], sizes = [8, 128], strides = [1, 1]} : vector<8x512xf32> to vector<8x128xf32>
    %282 = math.tanh %281 : vector<8x128xf32>
    %283 = vector.extract_strided_slice %264 {offsets = [0, 384], sizes = [8, 128], strides = [1, 1]} : vector<8x512xf32> to vector<8x128xf32>
    %cst_97 = arith.constant 5.000000e-01 : f32
    %284 = vector.broadcast %cst_97 : f32 to vector<8x128xf32>
    %285 = arith.mulf %284, %283 : vector<8x128xf32>
    %286 = math.tanh %285 : vector<8x128xf32>
    %cst_98 = arith.constant 1.000000e+00 : f32
    %287 = vector.broadcast %cst_98 : f32 to vector<8x128xf32>
    %288 = arith.addf %286, %287 : vector<8x128xf32>
    %cst_99 = arith.constant 5.000000e-01 : f32
    %289 = vector.broadcast %cst_99 : f32 to vector<8x128xf32>
    %290 = arith.mulf %289, %288 : vector<8x128xf32>
    %291 = arith.mulf %280, %255 : vector<8x128xf32>
    %292 = arith.mulf %272, %282 : vector<8x128xf32>
    %293 = arith.addf %291, %292 : vector<8x128xf32>
    %294 = math.tanh %293 : vector<8x128xf32>
    %295 = arith.mulf %290, %294 : vector<8x128xf32>
    %c7_i32 = arith.constant 7 : i32
    %c8_i32_100 = arith.constant 8 : i32
    %296 = arith.muli %c7_i32, %c8_i32_100 : i32
    %297 = tpu.assume_multiple %296, 8 : i32
    %298 = arith.index_cast %297 : i32 to index
    %c0_101 = arith.constant 0 : index
    %299 = vector.load %arg7[%298, %c0_101] : memref<64x512xf32, #tpu.memory_space<vmem>>, vector<8x512xf32>
    %300 = arith.truncf %295 : vector<8x128xf32> to vector<8x128xbf16>
    %cst_102 = arith.constant dense<0.000000e+00> : vector<8x512xf32>
    %301 = tpu.matmul %300, %27, %cst_102 {dimension_numbers = #tpu.dot_dimension_numbers<[1], [0], [0], [1], [0, 0, 1, 1], [], []>} : vector<8x128xbf16>, vector<128x512xbf16>, vector<8x512xf32> -> vector<8x512xf32>
    %302 = arith.addf %299, %301 : vector<8x512xf32>
    %303 = vector.extract_strided_slice %302 {offsets = [0, 0], sizes = [8, 128], strides = [1, 1]} : vector<8x512xf32> to vector<8x128xf32>
    %cst_103 = arith.constant 5.000000e-01 : f32
    %304 = vector.broadcast %cst_103 : f32 to vector<8x128xf32>
    %305 = arith.mulf %304, %303 : vector<8x128xf32>
    %306 = math.tanh %305 : vector<8x128xf32>
    %cst_104 = arith.constant 1.000000e+00 : f32
    %307 = vector.broadcast %cst_104 : f32 to vector<8x128xf32>
    %308 = arith.addf %306, %307 : vector<8x128xf32>
    %cst_105 = arith.constant 5.000000e-01 : f32
    %309 = vector.broadcast %cst_105 : f32 to vector<8x128xf32>
    %310 = arith.mulf %309, %308 : vector<8x128xf32>
    %311 = vector.extract_strided_slice %302 {offsets = [0, 128], sizes = [8, 128], strides = [1, 1]} : vector<8x512xf32> to vector<8x128xf32>
    %cst_106 = arith.constant 5.000000e-01 : f32
    %312 = vector.broadcast %cst_106 : f32 to vector<8x128xf32>
    %313 = arith.mulf %312, %311 : vector<8x128xf32>
    %314 = math.tanh %313 : vector<8x128xf32>
    %cst_107 = arith.constant 1.000000e+00 : f32
    %315 = vector.broadcast %cst_107 : f32 to vector<8x128xf32>
    %316 = arith.addf %314, %315 : vector<8x128xf32>
    %cst_108 = arith.constant 5.000000e-01 : f32
    %317 = vector.broadcast %cst_108 : f32 to vector<8x128xf32>
    %318 = arith.mulf %317, %316 : vector<8x128xf32>
    %319 = vector.extract_strided_slice %302 {offsets = [0, 256], sizes = [8, 128], strides = [1, 1]} : vector<8x512xf32> to vector<8x128xf32>
    %320 = math.tanh %319 : vector<8x128xf32>
    %321 = vector.extract_strided_slice %302 {offsets = [0, 384], sizes = [8, 128], strides = [1, 1]} : vector<8x512xf32> to vector<8x128xf32>
    %cst_109 = arith.constant 5.000000e-01 : f32
    %322 = vector.broadcast %cst_109 : f32 to vector<8x128xf32>
    %323 = arith.mulf %322, %321 : vector<8x128xf32>
    %324 = math.tanh %323 : vector<8x128xf32>
    %cst_110 = arith.constant 1.000000e+00 : f32
    %325 = vector.broadcast %cst_110 : f32 to vector<8x128xf32>
    %326 = arith.addf %324, %325 : vector<8x128xf32>
    %cst_111 = arith.constant 5.000000e-01 : f32
    %327 = vector.broadcast %cst_111 : f32 to vector<8x128xf32>
    %328 = arith.mulf %327, %326 : vector<8x128xf32>
    %329 = arith.mulf %318, %293 : vector<8x128xf32>
    %330 = arith.mulf %310, %320 : vector<8x128xf32>
    %331 = arith.addf %329, %330 : vector<8x128xf32>
    %332 = math.tanh %331 : vector<8x128xf32>
    %333 = arith.mulf %328, %332 : vector<8x128xf32>
    %c8_i32_112 = arith.constant 8 : i32
    %c0_113 = arith.constant 0 : index
    %c0_114 = arith.constant 0 : index
    %334 = vector.load %arg6[%c0_113, %c0_114] : memref<8x128xf32, #tpu.memory_space<vmem>>, vector<8x128xf32>
    tpu.vector_store %arg6[%c0_113, %c0_114], %333 {strides = array<i32>} : memref<8x128xf32, #tpu.memory_space<vmem>>, vector<8x128xf32>,
    return
  }
}

</mosaic_0001>

<llo_original>
// kernel: tpu_custom_call.1
$region0: #{tpu_custom_call.1}
  #allocation0 [shape = 'u32[]', space=smem, size = 0x4, offset = 0x4, fixed_abs, tag = 'smem constant byte address 0x4 - core index']
  #allocation1 [shape = 'u32[144,128]{1,0:T(1,128)}', space=vmem, size = 0x12000, scoped, tag = 'internal scratch']
  #allocation2 [shape = 'f32[64,512]{1,0:T(8,128)}', space=vmem, size = 0x20000, scoped, tag = 'scratch operand']
  %s0 = inlined_call_operand.vmem [shape: f32[64,2], index: 0, kind: input, shape index: {}]
  %s1 = inlined_call_operand.vmem [shape: f32[2,16], index: 1, kind: input, shape index: {}]
  %s2 = inlined_call_operand.vmem [shape: f32[1,16], index: 2, kind: input, shape index: {}]
  %s3 = inlined_call_operand.vmem [shape: f32[16,512], index: 3, kind: input, shape index: {}]
  %s4 = inlined_call_operand.hbm [shape: bf16[128,512], index: 4, kind: input, shape index: {}]
  %s5 = inlined_call_operand.vmem [shape: f32[1,512], index: 5, kind: input, shape index: {}]
  %s6 = inlined_call_operand.hbm [shape: f32[8,128], index: 6, kind: output, shape index: {}]
  %s7 = sld [smem:[#allocation0]]
  $region38: #{tpu_custom_call.1} parent=0
    _
  %s9 = ssub.s32 1, %s7
  %s10 = scalar_select 0, %s9, %s7
  $region1: #{tpu_custom_call.1} parent=0
    #allocation3 [shape = 'u8[131072]{0}', space=vmem, size = 0x20000, scoped, tag = 'input window, operand 4, single buffered']
    #allocation4 [shape = 's32[1]{0}', space=sflag, size = 0x4, scoped, tag = 'scoped memory for tpu_custom_call.1']
    #allocation5 [shape = 's32[1]{0}', space=sflag, size = 0x4, scoped, tag = 'scoped memory for tpu_custom_call.1']
    #allocation6 [shape = 'u8[4096]{0}', space=vmem, size = 0x1000, scoped, tag = 'output window, operand 0, single buffered']
    %11 = vsyncpa [#allocation4], 0
    %12 = vsyncpa [#allocation5], 0
    // Predicated region
    $region2: #{tpu_custom_call.1} parent=1 // pred_check
      _
    $region3: #{tpu_custom_call.1} parent=1 // pred_check_branch
      %14 = sbr.rel (0) target = $region5
    $region4: #{tpu_custom_call.1} parent=1 // pred_region
      _
    $region5: #{tpu_custom_call.1} parent=1 // pred_fallthru
      _
    // Predicated region
    $region6: #{tpu_custom_call.1} parent=1 // pred_check
      _
    $region7: #{tpu_custom_call.1} parent=1 // pred_check_branch
      %16 = sbr.rel (0) target = $region9
    $region8: #{tpu_custom_call.1} parent=1 // pred_region
      _
    $region9: #{tpu_custom_call.1} parent=1 // pred_fallthru
      _
    // Predicated region
    $region10: #{tpu_custom_call.1} parent=1 // pred_check
      _
    $region11: #{tpu_custom_call.1} parent=1 // pred_check_branch
      %18 = sbr.rel (0) target = $region13
    $region12: #{tpu_custom_call.1} parent=1 // pred_region
      _
    $region13: #{tpu_custom_call.1} parent=1 // pred_fallthru
      _
    // Predicated region
    $region14: #{tpu_custom_call.1} parent=1 // pred_check
      _
    $region15: #{tpu_custom_call.1} parent=1 // pred_check_branch
      %20 = sbr.rel (0) target = $region17
    $region16: #{tpu_custom_call.1} parent=1 // pred_region
      _
    $region17: #{tpu_custom_call.1} parent=1 // pred_fallthru
      _
    // Predicated region
    $region18: #{tpu_custom_call.1} parent=1 // pred_check
      _
    $region19: #{tpu_custom_call.1} parent=1 // pred_check_branch
      %22 = sbr.rel (0) target = $region21
    $region20: #{tpu_custom_call.1} parent=1 // pred_region
      %s24 = ssub.s32 4096, 4096
      %25 = vsyncadd [#allocation4], %s24
      %s26 = sshll.u32 [#allocation3], 4
      %s27 = int_to_ptr.vmem [resolvable:$true] %s26
      %32 = dma.hbm_to_vmem [thread:$0]  %s4, 4096, %s27, [#allocation4], 256, 256, 16
    $region21: #{tpu_custom_call.1} parent=1 // pred_fallthru
      _
    // Predicated region
    $region22: #{tpu_custom_call.1} parent=1 // pred_check
      _
    $region23: #{tpu_custom_call.1} parent=1 // pred_check_branch
      %34 = sbr.rel (0) target = $region25
    $region24: #{tpu_custom_call.1} parent=1 // pred_region
      _
    $region25: #{tpu_custom_call.1} parent=1 // pred_fallthru
      _
    // Predicated region
    $region26: #{tpu_custom_call.1} parent=1 // pred_check
      _
    $region27: #{tpu_custom_call.1} parent=1 // pred_check_branch
      %36 = sbr.rel (0) target = $region29
    $region28: #{tpu_custom_call.1} parent=1 // pred_region
      %37 = dma.done [#allocation4], 4096
    $region29: #{tpu_custom_call.1} parent=1 // pred_fallthru
      _
    %v39 = vld [vmem:[%s0] sm:$0xff]
    %v40 = vld [vmem:[%s0 + $0x8] sm:$0xff]
    %v41 = vld [vmem:[%s0 + $0x10] sm:$0xff]
    %v42 = vld [vmem:[%s0 + $0x18] sm:$0xff]
    %v43 = vld [vmem:[%s0 + $0x20] sm:$0xff]
    %v44 = vld [vmem:[%s0 + $0x28] sm:$0xff]
    %v45 = vld [vmem:[%s0 + $0x30] sm:$0xff]
    %v46 = vld [vmem:[%s0 + $0x38] sm:$0xff]
    %v47 = vld [vmem:[%s1] sm:$0x3]
    %49 = vset.pattern.permute.xlu0 0
    %50 = vperm.xlu0 %49, %v39
    %v51 = vpop.permute.xlu0 %50
    %54 = vset.pattern.permute.xlu0 0
    %55 = vperm.xlu0 %54, %v40
    %v56 = vpop.permute.xlu0 %55
    %59 = vset.pattern.permute.xlu0 0
    %60 = vperm.xlu0 %59, %v41
    %v61 = vpop.permute.xlu0 %60
    %64 = vset.pattern.permute.xlu0 0
    %65 = vperm.xlu0 %64, %v42
    %v66 = vpop.permute.xlu0 %65
    %69 = vset.pattern.permute.xlu0 0
    %70 = vperm.xlu0 %69, %v43
    %v71 = vpop.permute.xlu0 %70
    %74 = vset.pattern.permute.xlu0 0
    %75 = vperm.xlu0 %74, %v44
    %v76 = vpop.permute.xlu0 %75
    %79 = vset.pattern.permute.xlu0 0
    %80 = vperm.xlu0 %79, %v45
    %v81 = vpop.permute.xlu0 %80
    %84 = vset.pattern.permute.xlu0 0
    %85 = vperm.xlu0 %84, %v46
    %v86 = vpop.permute.xlu0 %85
    %v88 = vlaneseq
    %v89 = vshrl.u32 %v88, 7
    %v90 = vsub.s32 0, %v89
    %v91 = vrot.slane %v47, %v90
    %v92 = vmul.f32 %v51, %v91
    %v93 = vmul.f32 %v56, %v91
    %v94 = vmul.f32 %v61, %v91
    %v95 = vmul.f32 %v66, %v91
    %v96 = vmul.f32 %v71, %v91
    %v97 = vmul.f32 %v76, %v91
    %v98 = vmul.f32 %v81, %v91
    %v99 = vmul.f32 %v86, %v91
    %100 = vset.pattern.permute.xlu0 1
    %101 = vperm.xlu0 %100, %v39
    %v102 = vpop.permute.xlu0 %101
    %104 = vset.pattern.permute.xlu0 1
    %105 = vperm.xlu0 %104, %v40
    %v106 = vpop.permute.xlu0 %105
    %108 = vset.pattern.permute.xlu0 1
    %109 = vperm.xlu0 %108, %v41
    %v110 = vpop.permute.xlu0 %109
    %112 = vset.pattern.permute.xlu0 1
    %113 = vperm.xlu0 %112, %v42
    %v114 = vpop.permute.xlu0 %113
    %116 = vset.pattern.permute.xlu0 1
    %117 = vperm.xlu0 %116, %v43
    %v118 = vpop.permute.xlu0 %117
    %120 = vset.pattern.permute.xlu0 1
    %121 = vperm.xlu0 %120, %v44
    %v122 = vpop.permute.xlu0 %121
    %124 = vset.pattern.permute.xlu0 1
    %125 = vperm.xlu0 %124, %v45
    %v126 = vpop.permute.xlu0 %125
    %128 = vset.pattern.permute.xlu0 1
    %129 = vperm.xlu0 %128, %v46
    %v130 = vpop.permute.xlu0 %129
    %v132 = vlaneseq
    %v133 = vshrl.u32 %v132, 7
    %v134 = vsub.s32 1, %v133
    %v135 = vrot.slane %v47, %v134
    %v136 = vmul.f32 %v102, %v135
    %v137 = vmul.f32 %v106, %v135
    %v138 = vmul.f32 %v110, %v135
    %v139 = vmul.f32 %v114, %v135
    %v140 = vmul.f32 %v118, %v135
    %v141 = vmul.f32 %v122, %v135
    %v142 = vmul.f32 %v126, %v135
    %v143 = vmul.f32 %v130, %v135
    %v144 = vadd.f32 %v92, %v136
    %v145 = vadd.f32 %v93, %v137
    %v146 = vadd.f32 %v94, %v138
    %v147 = vadd.f32 %v95, %v139
    %v148 = vadd.f32 %v96, %v140
    %v149 = vadd.f32 %v97, %v141
    %v150 = vadd.f32 %v98, %v142
    %v151 = vadd.f32 %v99, %v143
    %v152 = vld [vmem:[%s2] sm:$0x1]
    %v154 = vlaneseq
    %v155 = vshrl.u32 %v154, 7
    %v156 = vsub.s32 0, %v155
    %v157 = vrot.slane %v152, %v156
    %v159 = vadd.f32 %v144, %v157
    %v160 = vadd.f32 %v145, %v157
    %v161 = vadd.f32 %v146, %v157
    %v162 = vadd.f32 %v147, %v157
    %v163 = vadd.f32 %v148, %v157
    %v164 = vadd.f32 %v149, %v157
    %v165 = vadd.f32 %v150, %v157
    %v166 = vadd.f32 %v151, %v157
    %vm167 = vcmp.gt.f32.partialorder %v159, 0.0
    %vm168 = vcmp.gt.f32.partialorder %v160, 0.0
    %vm169 = vcmp.gt.f32.partialorder %v161, 0.0
    %vm170 = vcmp.gt.f32.partialorder %v162, 0.0
    %vm171 = vcmp.gt.f32.partialorder %v163, 0.0
    %vm172 = vcmp.gt.f32.partialorder %v164, 0.0
    %vm173 = vcmp.gt.f32.partialorder %v165, 0.0
    %vm174 = vcmp.gt.f32.partialorder %v166, 0.0
    %v175 = vmul.f32 %v159, 0.01
    %v176 = vmul.f32 %v160, 0.01
    %v177 = vmul.f32 %v161, 0.01
    %v178 = vmul.f32 %v162, 0.01
    %v179 = vmul.f32 %v163, 0.01
    %v180 = vmul.f32 %v164, 0.01
    %v181 = vmul.f32 %v165, 0.01
    %v182 = vmul.f32 %v166, 0.01
    %v183 = vsel %vm167, %v159, %v175
    %v184 = vsel %vm168, %v160, %v176
    %v185 = vsel %vm169, %v161, %v177
    %v186 = vsel %vm170, %v162, %v178
    %v187 = vsel %vm171, %v163, %v179
    %v188 = vsel %vm172, %v164, %v180
    %v189 = vsel %vm173, %v165, %v181
    %v190 = vsel %vm174, %v166, %v182
    %v191 = vld [vmem:[%s3] sm:$0xff]
    %v192 = vld [vmem:[%s3 + $0x8] sm:$0xff]
    %v193 = vld [vmem:[%s3 + $0x10] sm:$0xff]
    %v194 = vld [vmem:[%s3 + $0x18] sm:$0xff]
    %v195 = vld [vmem:[%s3 + $0x20] sm:$0xff]
    %v196 = vld [vmem:[%s3 + $0x28] sm:$0xff]
    %v197 = vld [vmem:[%s3 + $0x30] sm:$0xff]
    %v198 = vld [vmem:[%s3 + $0x38] sm:$0xff]
    %v199 = vld [vmem:[%s5] sm:$0xf]
    %v201 = vlaneseq
    %v202 = vshrl.u32 %v201, 7
    %v203 = vsub.s32 0, %v202
    %v204 = vrot.slane %v199, %v203
    %v205 = vlaneseq
    %v206 = vshrl.u32 %v205, 7
    %v207 = vsub.s32 1, %v206
    %v208 = vrot.slane %v199, %v207
    %v209 = vlaneseq
    %v210 = vshrl.u32 %v209, 7
    %v211 = vsub.s32 2, %v210
    %v212 = vrot.slane %v199, %v211
    %v213 = vlaneseq
    %v214 = vshrl.u32 %v213, 7
    %v215 = vsub.s32 3, %v214
    %v216 = vrot.slane %v199, %v215
    %vm221 = vcmask 130048
    %v223 = vsel %vm221, %v183, 0
    %v226 = vsel %vm221, %v184, 0
    %v229 = vsel %vm221, %v185, 0
    %v232 = vsel %vm221, %v186, 0
    %v235 = vsel %vm221, %v187, 0
    %v238 = vsel %vm221, %v188, 0
    %v241 = vsel %vm221, %v189, 0
    %v244 = vsel %vm221, %v190, 0
    %246 = vmatprep.subr.mxu0 %v192
    %247 = vmatpush1.msra.mxu0 %v191
    %248 = vmatprep.subr.mxu0 %v196
    %249 = vmatpush1.msra.mxu0 %v195
    %250 = vmatprep.subr.mxu0 0.0
    %251 = vmatpush1.msra.mxu0 0.0
    %252 = vmatprep.subr.mxu0 0.0
    %253 = vmatpush1.msra.mxu0 0.0
    %254 = vmatprep.subr.mxu0 0.0
    %255 = vmatpush1.msra.mxu0 0.0
    %256 = vmatprep.subr.mxu0 0.0
    %257 = vmatpush1.msra.mxu0 0.0
    %258 = vmatprep.subr.mxu0 0.0
    %259 = vmatpush1.msra.mxu0 0.0
    %260 = vmatprep.subr.mxu0 0.0
    %261 = vmatpush1.msra.mxu0 0.0
    %262 = vmatprep.subr.mxu0 0.0
    %263 = vmatpush1.msra.mxu0 0.0
    %264 = vmatprep.subr.mxu0 0.0
    %265 = vmatpush1.msra.mxu0 0.0
    %266 = vmatprep.subr.mxu0 0.0
    %267 = vmatpush1.msra.mxu0 0.0
    %268 = vmatprep.subr.mxu0 0.0
    %269 = vmatpush1.msra.mxu0 0.0
    %270 = vmatprep.subr.mxu0 0.0
    %271 = vmatpush1.msra.mxu0 0.0
    %272 = vmatprep.subr.mxu0 0.0
    %273 = vmatpush1.msra.mxu0 0.0
    %274 = vmatprep.subr.mxu0 0.0
    %275 = vmatpush1.msra.mxu0 0.0
    %276 = vmatprep.subr.mxu0 0.0
    %277 = vmatpush1.msra.mxu0 0.0
    %278 = vmatprep.subr.mxu0 0.0
    %279 = vmatpush1.msra.mxu0 0.0
    %280 = vmatprep.subr.mxu0 0.0
    %281 = vmatpush1.msra.mxu0 0.0
    %282 = vmatprep.subr.mxu0 0.0
    %283 = vmatpush1.msra.mxu0 0.0
    %284 = vmatprep.subr.mxu0 0.0
    %285 = vmatpush1.msra.mxu0 0.0
    %286 = vmatprep.subr.mxu0 0.0
    %287 = vmatpush1.msra.mxu0 0.0
    %288 = vmatprep.subr.mxu0 0.0
    %289 = vmatpush1.msra.mxu0 0.0
    %290 = vmatprep.subr.mxu0 0.0
    %291 = vmatpush1.msra.mxu0 0.0
    %292 = vmatprep.subr.mxu0 0.0
    %293 = vmatpush1.msra.mxu0 0.0
    %294 = vmatprep.subr.mxu0 0.0
    %295 = vmatpush1.msra.mxu0 0.0
    %296 = vmatprep.subr.mxu0 0.0
    %297 = vmatpush1.msra.mxu0 0.0
    %298 = vmatprep.subr.mxu0 0.0
    %299 = vmatpush1.msra.mxu0 0.0
    %300 = vmatprep.subr.mxu0 0.0
    %301 = vmatpush1.msra.mxu0 0.0
    %302 = vmatprep.subr.mxu0 0.0
    %303 = vmatpush1.msra.mxu0 0.0
    %304 = vmatprep.subr.mxu0 0.0
    %305 = vmatpush1.msra.mxu0 0.0
    %306 = vmatprep.subr.mxu0 0.0
    %307 = vmatpush1.msra.mxu0 0.0
    %308 = vmatprep.subr.mxu0 0.0
    %309 = vmatpush1.msra.mxu0 0.0
    %310 = vmatprep.mubr.f32.mxu0 0.0
    %311 = vmatmul.mubr.f32.gmra.mrb[0].mxu0 %v223
    %v312 = vpop.f32.mrb[0].mxu0
    %v313 = vadd.f32 %v204, %v312
    %v314 = vpop.f32.mrb[0].mxu0
    %v315 = vadd.f32 %v208, %v314
    %316 = vmatprep.mubr.f32.mxu0 0.0
    %317 = vmatmul.mubr.f32.gmra.mrb[0].mxu0 %v226
    %v318 = vpop.f32.mrb[0].mxu0
    %v319 = vadd.f32 %v204, %v318
    %v320 = vpop.f32.mrb[0].mxu0
    %v321 = vadd.f32 %v208, %v320
    %322 = vmatprep.mubr.f32.mxu0 0.0
    %323 = vmatmul.mubr.f32.gmra.mrb[0].mxu0 %v229
    %v324 = vpop.f32.mrb[0].mxu0
    %v325 = vadd.f32 %v204, %v324
    %v326 = vpop.f32.mrb[0].mxu0
    %v327 = vadd.f32 %v208, %v326
    %328 = vmatprep.mubr.f32.mxu0 0.0
    %329 = vmatmul.mubr.f32.gmra.mrb[0].mxu0 %v232
    %v330 = vpop.f32.mrb[0].mxu0
    %v331 = vadd.f32 %v204, %v330
    %v332 = vpop.f32.mrb[0].mxu0
    %v333 = vadd.f32 %v208, %v332
    %334 = vmatprep.mubr.f32.mxu0 0.0
    %335 = vmatmul.mubr.f32.gmra.mrb[0].mxu0 %v235
    %v336 = vpop.f32.mrb[0].mxu0
    %v337 = vadd.f32 %v204, %v336
    %v338 = vpop.f32.mrb[0].mxu0
    %v339 = vadd.f32 %v208, %v338
    %340 = vmatprep.mubr.f32.mxu0 0.0
    %341 = vmatmul.mubr.f32.gmra.mrb[0].mxu0 %v238
    %v342 = vpop.f32.mrb[0].mxu0
    %v343 = vadd.f32 %v204, %v342
    %v344 = vpop.f32.mrb[0].mxu0
    %v345 = vadd.f32 %v208, %v344
    %346 = vmatprep.mubr.f32.mxu0 0.0
    %347 = vmatmul.mubr.f32.gmra.mrb[0].mxu0 %v241
    %v348 = vpop.f32.mrb[0].mxu0
    %v349 = vadd.f32 %v204, %v348
    %v350 = vpop.f32.mrb[0].mxu0
    %v351 = vadd.f32 %v208, %v350
    %352 = vmatprep.mubr.f32.mxu0 0.0
    %353 = vmatmul.mubr.f32.gmra.mrb[0].mxu0 %v244
    %v354 = vpop.f32.mrb[0].mxu0
    %v355 = vadd.f32 %v204, %v354
    %v356 = vpop.f32.mrb[0].mxu0
    %v357 = vadd.f32 %v208, %v356
    %358 = vdwg.mxu0
    %359 = vmatprep.subr.mxu0 %v194
    %360 = vmatpush1.msra.mxu0 %v193
    %361 = vmatprep.subr.mxu0 %v198
    %362 = vmatpush1.msra.mxu0 %v197
    %363 = vmatprep.subr.mxu0 0.0
    %364 = vmatpush1.msra.mxu0 0.0
    %365 = vmatprep.subr.mxu0 0.0
    %366 = vmatpush1.msra.mxu0 0.0
    %367 = vmatprep.subr.mxu0 0.0
    %368 = vmatpush1.msra.mxu0 0.0
    %369 = vmatprep.subr.mxu0 0.0
    %370 = vmatpush1.msra.mxu0 0.0
    %371 = vmatprep.subr.mxu0 0.0
    %372 = vmatpush1.msra.mxu0 0.0
    %373 = vmatprep.subr.mxu0 0.0
    %374 = vmatpush1.msra.mxu0 0.0
    %375 = vmatprep.subr.mxu0 0.0
    %376 = vmatpush1.msra.mxu0 0.0
    %377 = vmatprep.subr.mxu0 0.0
    %378 = vmatpush1.msra.mxu0 0.0
    %379 = vmatprep.subr.mxu0 0.0
    %380 = vmatpush1.msra.mxu0 0.0
    %381 = vmatprep.subr.mxu0 0.0
    %382 = vmatpush1.msra.mxu0 0.0
    %383 = vmatprep.subr.mxu0 0.0
    %384 = vmatpush1.msra.mxu0 0.0
    %385 = vmatprep.subr.mxu0 0.0
    %386 = vmatpush1.msra.mxu0 0.0
    %387 = vmatprep.subr.mxu0 0.0
    %388 = vmatpush1.msra.mxu0 0.0
    %389 = vmatprep.subr.mxu0 0.0
    %390 = vmatpush1.msra.mxu0 0.0
    %391 = vmatprep.subr.mxu0 0.0
    %392 = vmatpush1.msra.mxu0 0.0
    %393 = vmatprep.subr.mxu0 0.0
    %394 = vmatpush1.msra.mxu0 0.0
    %395 = vmatprep.subr.mxu0 0.0
    %396 = vmatpush1.msra.mxu0 0.0
    %397 = vmatprep.subr.mxu0 0.0
    %398 = vmatpush1.msra.mxu0 0.0
    %399 = vmatprep.subr.mxu0 0.0
    %400 = vmatpush1.msra.mxu0 0.0
    %401 = vmatprep.subr.mxu0 0.0
    %402 = vmatpush1.msra.mxu0 0.0
    %403 = vmatprep.subr.mxu0 0.0
    %404 = vmatpush1.msra.mxu0 0.0
    %405 = vmatprep.subr.mxu0 0.0
    %406 = vmatpush1.msra.mxu0 0.0
    %407 = vmatprep.subr.mxu0 0.0
    %408 = vmatpush1.msra.mxu0 0.0
    %409 = vmatprep.subr.mxu0 0.0
    %410 = vmatpush1.msra.mxu0 0.0
    %411 = vmatprep.subr.mxu0 0.0
    %412 = vmatpush1.msra.mxu0 0.0
    %413 = vmatprep.subr.mxu0 0.0
    %414 = vmatpush1.msra.mxu0 0.0
    %415 = vmatprep.subr.mxu0 0.0
    %416 = vmatpush1.msra.mxu0 0.0
    %417 = vmatprep.subr.mxu0 0.0
    %418 = vmatpush1.msra.mxu0 0.0
    %419 = vmatprep.subr.mxu0 0.0
    %420 = vmatpush1.msra.mxu0 0.0
    %421 = vmatprep.subr.mxu0 0.0
    %422 = vmatpush1.msra.mxu0 0.0
    %423 = vmatprep.mubr.f32.mxu0 0.0
    %424 = vmatmul.mubr.f32.gmra.mrb[0].mxu0 %v223
    %v425 = vpop.f32.mrb[0].mxu0
    %v426 = vadd.f32 %v212, %v425
    %v427 = vpop.f32.mrb[0].mxu0
    %v428 = vadd.f32 %v216, %v427
    %429 = vmatprep.mubr.f32.mxu0 0.0
    %430 = vmatmul.mubr.f32.gmra.mrb[0].mxu0 %v226
    %v431 = vpop.f32.mrb[0].mxu0
    %v432 = vadd.f32 %v212, %v431
    %v433 = vpop.f32.mrb[0].mxu0
    %v434 = vadd.f32 %v216, %v433
    %435 = vmatprep.mubr.f32.mxu0 0.0
    %436 = vmatmul.mubr.f32.gmra.mrb[0].mxu0 %v229
    %v437 = vpop.f32.mrb[0].mxu0
    %v438 = vadd.f32 %v212, %v437
    %v439 = vpop.f32.mrb[0].mxu0
    %v440 = vadd.f32 %v216, %v439
    %441 = vmatprep.mubr.f32.mxu0 0.0
    %442 = vmatmul.mubr.f32.gmra.mrb[0].mxu0 %v232
    %v443 = vpop.f32.mrb[0].mxu0
    %v444 = vadd.f32 %v212, %v443
    %v445 = vpop.f32.mrb[0].mxu0
    %v446 = vadd.f32 %v216, %v445
    %447 = vmatprep.mubr.f32.mxu0 0.0
    %448 = vmatmul.mubr.f32.gmra.mrb[0].mxu0 %v235
    %v449 = vpop.f32.mrb[0].mxu0
    %v450 = vadd.f32 %v212, %v449
    %v451 = vpop.f32.mrb[0].mxu0
    %v452 = vadd.f32 %v216, %v451
    %453 = vmatprep.mubr.f32.mxu0 0.0
    %454 = vmatmul.mubr.f32.gmra.mrb[0].mxu0 %v238
    %v455 = vpop.f32.mrb[0].mxu0
    %v456 = vadd.f32 %v212, %v455
    %v457 = vpop.f32.mrb[0].mxu0
    %v458 = vadd.f32 %v216, %v457
    %459 = vmatprep.mubr.f32.mxu0 0.0
    %460 = vmatmul.mubr.f32.gmra.mrb[0].mxu0 %v241
    %v461 = vpop.f32.mrb[0].mxu0
    %v462 = vadd.f32 %v212, %v461
    %v463 = vpop.f32.mrb[0].mxu0
    %v464 = vadd.f32 %v216, %v463
    %465 = vmatprep.mubr.f32.mxu0 0.0
    %466 = vmatmul.mubr.f32.gmra.mrb[0].mxu0 %v244
    %v467 = vpop.f32.mrb[0].mxu0
    %v468 = vadd.f32 %v212, %v467
    %v469 = vpop.f32.mrb[0].mxu0
    %v470 = vadd.f32 %v216, %v469
    %471 = vdwg.mxu0
    %472 = vst [vmem:[#allocation2] sm:$0xff] %v313
    %473 = vst [vmem:[#allocation2 + $0x8] sm:$0xff] %v315
    %474 = vst [vmem:[#allocation2 + $0x10] sm:$0xff] %v426
    %475 = vst [vmem:[#allocation2 + $0x18] sm:$0xff] %v428
    %476 = vst [vmem:[#allocation2 + $0x20] sm:$0xff] %v319
    %477 = vst [vmem:[#allocation2 + $0x28] sm:$0xff] %v321
    %478 = vst [vmem:[#allocation2 + $0x30] sm:$0xff] %v432
    %479 = vst [vmem:[#allocation2 + $0x38] sm:$0xff] %v434
    %480 = vst [vmem:[#allocation2 + $0x40] sm:$0xff] %v325
    %481 = vst [vmem:[#allocation2 + $0x48] sm:$0xff] %v327
    %482 = vst [vmem:[#allocation2 + $0x50] sm:$0xff] %v438
    %483 = vst [vmem:[#allocation2 + $0x58] sm:$0xff] %v440
    %484 = vst [vmem:[#allocation2 + $0x60] sm:$0xff] %v331
    %485 = vst [vmem:[#allocation2 + $0x68] sm:$0xff] %v333
    %486 = vst [vmem:[#allocation2 + $0x70] sm:$0xff] %v444
    %487 = vst [vmem:[#allocation2 + $0x78] sm:$0xff] %v446
    %488 = vst [vmem:[#allocation2 + $0x80] sm:$0xff] %v337
    %489 = vst [vmem:[#allocation2 + $0x88] sm:$0xff] %v339
    %490 = vst [vmem:[#allocation2 + $0x90] sm:$0xff] %v450
    %491 = vst [vmem:[#allocation2 + $0x98] sm:$0xff] %v452
    %492 = vst [vmem:[#allocation2 + $0xa0] sm:$0xff] %v343
    %493 = vst [vmem:[#allocation2 + $0xa8] sm:$0xff] %v345
    %494 = vst [vmem:[#allocation2 + $0xb0] sm:$0xff] %v456
    %495 = vst [vmem:[#allocation2 + $0xb8] sm:$0xff] %v458
    %496 = vst [vmem:[#allocation2 + $0xc0] sm:$0xff] %v349
    %497 = vst [vmem:[#allocation2 + $0xc8] sm:$0xff] %v351
    %498 = vst [vmem:[#allocation2 + $0xd0] sm:$0xff] %v462
    %499 = vst [vmem:[#allocation2 + $0xd8] sm:$0xff] %v464
    %500 = vst [vmem:[#allocation2 + $0xe0] sm:$0xff] %v355
    %501 = vst [vmem:[#allocation2 + $0xe8] sm:$0xff] %v357
    %502 = vst [vmem:[#allocation2 + $0xf0] sm:$0xff] %v468
    %503 = vst [vmem:[#allocation2 + $0xf8] sm:$0xff] %v470
    %v504 = vld [vmem:[#allocation3] sm:$0xff]
    %v505 = vld [vmem:[#allocation3 + $0x8] sm:$0xff]
    %v506 = vld [vmem:[#allocation3 + $0x10] sm:$0xff]
    %v507 = vld [vmem:[#allocation3 + $0x18] sm:$0xff]
    %v508 = vld [vmem:[#allocation3 + $0x20] sm:$0xff]
    %v509 = vld [vmem:[#allocation3 + $0x28] sm:$0xff]
    %v510 = vld [vmem:[#allocation3 + $0x30] sm:$0xff]
    %v511 = vld [vmem:[#allocation3 + $0x38] sm:$0xff]
    %v512 = vld [vmem:[#allocation3 + $0x40] sm:$0xff]
    %v513 = vld [vmem:[#allocation3 + $0x48] sm:$0xff]
    %v514 = vld [vmem:[#allocation3 + $0x50] sm:$0xff]
    %v515 = vld [vmem:[#allocation3 + $0x58] sm:$0xff]
    %v516 = vld [vmem:[#allocation3 + $0x60] sm:$0xff]
    %v517 = vld [vmem:[#allocation3 + $0x68] sm:$0xff]
    %v518 = vld [vmem:[#allocation3 + $0x70] sm:$0xff]
    %v519 = vld [vmem:[#allocation3 + $0x78] sm:$0xff]
    %v520 = vld [vmem:[#allocation3 + $0x80] sm:$0xff]
    %v521 = vld [vmem:[#allocation3 + $0x88] sm:$0xff]
    %v522 = vld [vmem:[#allocation3 + $0x90] sm:$0xff]
    %v523 = vld [vmem:[#allocation3 + $0x98] sm:$0xff]
    %v524 = vld [vmem:[#allocation3 + $0xa0] sm:$0xff]
    %v525 = vld [vmem:[#allocation3 + $0xa8] sm:$0xff]
    %v526 = vld [vmem:[#allocation3 + $0xb0] sm:$0xff]
    %v527 = vld [vmem:[#allocation3 + $0xb8] sm:$0xff]
    %v528 = vld [vmem:[#allocation3 + $0xc0] sm:$0xff]
    %v529 = vld [vmem:[#allocation3 + $0xc8] sm:$0xff]
    %v530 = vld [vmem:[#allocation3 + $0xd0] sm:$0xff]
    %v531 = vld [vmem:[#allocation3 + $0xd8] sm:$0xff]
    %v532 = vld [vmem:[#allocation3 + $0xe0] sm:$0xff]
    %v533 = vld [vmem:[#allocation3 + $0xe8] sm:$0xff]
    %v534 = vld [vmem:[#allocation3 + $0xf0] sm:$0xff]
    %v535 = vld [vmem:[#allocation3 + $0xf8] sm:$0xff]
    %s536 = smul.u32 0, 4
    %s537 = smul.addr %s536, 8
    %s538 = scalar_lea.vmem [#allocation2], %s537
    %v539 = vld [vmem:[%s538] sm:$0xff]
    %v540 = vld [vmem:[%s538 + $0x8] sm:$0xff]
    %v541 = vld [vmem:[%s538 + $0x10] sm:$0xff]
    %v542 = vld [vmem:[%s538 + $0x18] sm:$0xff]
    %v575 = vunpack.c.l.b16 %v504
    %v576 = vunpack.c.h.b16 %v504
    %v577 = vunpack.c.l.b16 %v505
    %v578 = vunpack.c.h.b16 %v505
    %v579 = vunpack.c.l.b16 %v506
    %v580 = vunpack.c.h.b16 %v506
    %v581 = vunpack.c.l.b16 %v507
    %v582 = vunpack.c.h.b16 %v507
    %v583 = vunpack.c.l.b16 %v508
    %v584 = vunpack.c.h.b16 %v508
    %v585 = vunpack.c.l.b16 %v509
    %v586 = vunpack.c.h.b16 %v509
    %v587 = vunpack.c.l.b16 %v510
    %v588 = vunpack.c.h.b16 %v510
    %v589 = vunpack.c.l.b16 %v511
    %v590 = vunpack.c.h.b16 %v511
    %v591 = vunpack.c.l.b16 %v512
    %v592 = vunpack.c.h.b16 %v512
    %v593 = vunpack.c.l.b16 %v513
    %v594 = vunpack.c.h.b16 %v513
    %v595 = vunpack.c.l.b16 %v514
    %v596 = vunpack.c.h.b16 %v514
    %v597 = vunpack.c.l.b16 %v515
    %v598 = vunpack.c.h.b16 %v515
    %v599 = vunpack.c.l.b16 %v516
    %v600 = vunpack.c.h.b16 %v516
    %v601 = vunpack.c.l.b16 %v517
    %v602 = vunpack.c.h.b16 %v517
    %v603 = vunpack.c.l.b16 %v518
    %v604 = vunpack.c.h.b16 %v518
    %v605 = vunpack.c.l.b16 %v519
    %v606 = vunpack.c.h.b16 %v519
    %v607 = vunpack.c.l.b16 %v520
    %v608 = vunpack.c.h.b16 %v520
    %v609 = vunpack.c.l.b16 %v521
    %v610 = vunpack.c.h.b16 %v521
    %v611 = vunpack.c.l.b16 %v522
    %v612 = vunpack.c.h.b16 %v522
    %v613 = vunpack.c.l.b16 %v523
    %v614 = vunpack.c.h.b16 %v523
    %v615 = vunpack.c.l.b16 %v524
    %v616 = vunpack.c.h.b16 %v524
    %v617 = vunpack.c.l.b16 %v525
    %v618 = vunpack.c.h.b16 %v525
    %v619 = vunpack.c.l.b16 %v526
    %v620 = vunpack.c.h.b16 %v526
    %v621 = vunpack.c.l.b16 %v527
    %v622 = vunpack.c.h.b16 %v527
    %v623 = vunpack.c.l.b16 %v528
    %v624 = vunpack.c.h.b16 %v528
    %v625 = vunpack.c.l.b16 %v529
    %v626 = vunpack.c.h.b16 %v529
    %v627 = vunpack.c.l.b16 %v530
    %v628 = vunpack.c.h.b16 %v530
    %v629 = vunpack.c.l.b16 %v531
    %v630 = vunpack.c.h.b16 %v531
    %v631 = vunpack.c.l.b16 %v532
    %v632 = vunpack.c.h.b16 %v532
    %v633 = vunpack.c.l.b16 %v533
    %v634 = vunpack.c.h.b16 %v533
    %v635 = vunpack.c.l.b16 %v534
    %v636 = vunpack.c.h.b16 %v534
    %v637 = vunpack.c.l.b16 %v535
    %v638 = vunpack.c.h.b16 %v535
    %v639 = vpack.c.b16 %v579, %v575
    %v640 = vpack.c.b16 %v580, %v576
    %v641 = vpack.c.b16 %v581, %v577
    %v642 = vpack.c.b16 %v582, %v578
    %v643 = vpack.c.b16 %v587, %v583
    %v644 = vpack.c.b16 %v588, %v584
    %v645 = vpack.c.b16 %v589, %v585
    %v646 = vpack.c.b16 %v590, %v586
    %v647 = vpack.c.b16 %v595, %v591
    %v648 = vpack.c.b16 %v596, %v592
    %v649 = vpack.c.b16 %v597, %v593
    %v650 = vpack.c.b16 %v598, %v594
    %v651 = vpack.c.b16 %v603, %v599
    %v652 = vpack.c.b16 %v604, %v600
    %v653 = vpack.c.b16 %v605, %v601
    %v654 = vpack.c.b16 %v606, %v602
    %v655 = vpack.c.b16 %v611, %v607
    %v656 = vpack.c.b16 %v612, %v608
    %v657 = vpack.c.b16 %v613, %v609
    %v658 = vpack.c.b16 %v614, %v610
    %v659 = vpack.c.b16 %v619, %v615
    %v660 = vpack.c.b16 %v620, %v616
    %v661 = vpack.c.b16 %v621, %v617
    %v662 = vpack.c.b16 %v622, %v618
    %v663 = vpack.c.b16 %v627, %v623
    %v664 = vpack.c.b16 %v628, %v624
    %v665 = vpack.c.b16 %v629, %v625
    %v666 = vpack.c.b16 %v630, %v626
    %v667 = vpack.c.b16 %v635, %v631
    %v668 = vpack.c.b16 %v636, %v632
    %v669 = vpack.c.b16 %v637, %v633
    %v670 = vpack.c.b16 %v638, %v634
    %703 = vmatprep.subr.bf16.mxu0 %v640
    %704 = vmatpush1.bf16.msra.mxu0 %v639
    %705 = vmatprep.subr.bf16.mxu0 %v644
    %706 = vmatpush1.bf16.msra.mxu0 %v643
    %707 = vmatprep.subr.bf16.mxu0 %v648
    %708 = vmatpush1.bf16.msra.mxu0 %v647
    %709 = vmatprep.subr.bf16.mxu0 %v652
    %710 = vmatpush1.bf16.msra.mxu0 %v651
    %711 = vmatprep.subr.bf16.mxu0 %v656
    %712 = vmatpush1.bf16.msra.mxu0 %v655
    %713 = vmatprep.subr.bf16.mxu0 %v660
    %714 = vmatpush1.bf16.msra.mxu0 %v659
    %715 = vmatprep.subr.bf16.mxu0 %v664
    %716 = vmatpush1.bf16.msra.mxu0 %v663
    %717 = vmatprep.subr.bf16.mxu0 %v668
    %718 = vmatpush1.bf16.msra.mxu0 %v667
    %719 = vmatprep.subr.bf16.mxu0 0
    %720 = vmatpush1.bf16.msra.mxu0 0
    %721 = vmatprep.subr.bf16.mxu0 0
    %722 = vmatpush1.bf16.msra.mxu0 0
    %723 = vmatprep.subr.bf16.mxu0 0
    %724 = vmatpush1.bf16.msra.mxu0 0
    %725 = vmatprep.subr.bf16.mxu0 0
    %726 = vmatpush1.bf16.msra.mxu0 0
    %727 = vmatprep.subr.bf16.mxu0 0
    %728 = vmatpush1.bf16.msra.mxu0 0
    %729 = vmatprep.subr.bf16.mxu0 0
    %730 = vmatpush1.bf16.msra.mxu0 0
    %731 = vmatprep.subr.bf16.mxu0 0
    %732 = vmatpush1.bf16.msra.mxu0 0
    %733 = vmatprep.subr.bf16.mxu0 0
    %734 = vmatpush1.bf16.msra.mxu0 0
    %735 = vmatprep.mubr.bf16.mxu0 0
    %736 = vmatmul.mubr.bf16.gmra.mrb[0].mxu0 0
    %v737 = vpop.f32.mrb[0].mxu0
    %v738 = vadd.f32 0.0, %v737
    %v739 = vpop.f32.mrb[0].mxu0
    %v740 = vadd.f32 0.0, %v739
    %v741 = vpop.f32.mrb[0].mxu0
    %v742 = vpop.f32.mrb[0].mxu0
    %743 = vdwg.mxu0
    %744 = vmatprep.subr.bf16.mxu0 %v642
    %745 = vmatpush1.bf16.msra.mxu0 %v641
    %746 = vmatprep.subr.bf16.mxu0 %v646
    %747 = vmatpush1.bf16.msra.mxu0 %v645
    %748 = vmatprep.subr.bf16.mxu0 %v650
    %749 = vmatpush1.bf16.msra.mxu0 %v649
    %750 = vmatprep.subr.bf16.mxu0 %v654
    %751 = vmatpush1.bf16.msra.mxu0 %v653
    %752 = vmatprep.subr.bf16.mxu0 %v658
    %753 = vmatpush1.bf16.msra.mxu0 %v657
    %754 = vmatprep.subr.bf16.mxu0 %v662
    %755 = vmatpush1.bf16.msra.mxu0 %v661
    %756 = vmatprep.subr.bf16.mxu0 %v666
    %757 = vmatpush1.bf16.msra.mxu0 %v665
    %758 = vmatprep.subr.bf16.mxu0 %v670
    %759 = vmatpush1.bf16.msra.mxu0 %v669
    %760 = vmatprep.subr.bf16.mxu0 0
    %761 = vmatpush1.bf16.msra.mxu0 0
    %762 = vmatprep.subr.bf16.mxu0 0
    %763 = vmatpush1.bf16.msra.mxu0 0
    %764 = vmatprep.subr.bf16.mxu0 0
    %765 = vmatpush1.bf16.msra.mxu0 0
    %766 = vmatprep.subr.bf16.mxu0 0
    %767 = vmatpush1.bf16.msra.mxu0 0
    %768 = vmatprep.subr.bf16.mxu0 0
    %769 = vmatpush1.bf16.msra.mxu0 0
    %770 = vmatprep.subr.bf16.mxu0 0
    %771 = vmatpush1.bf16.msra.mxu0 0
    %772 = vmatprep.subr.bf16.mxu0 0
    %773 = vmatpush1.bf16.msra.mxu0 0
    %774 = vmatprep.subr.bf16.mxu0 0
    %775 = vmatpush1.bf16.msra.mxu0 0
    %776 = vmatprep.mubr.bf16.mxu0 0
    %777 = vmatmul.mubr.bf16.gmra.mrb[0].mxu0 0
    %v778 = vpop.f32.mrb[0].mxu0
    %v779 = vadd.f32 0.0, %v778
    %v780 = vpop.f32.mrb[0].mxu0
    %v781 = vadd.f32 0.0, %v780
    %v782 = vpop.f32.mrb[0].mxu0
    %v783 = vpop.f32.mrb[0].mxu0
    %784 = vdwg.mxu0
    %v785 = vadd.f32 %v539, %v738
    %v786 = vadd.f32 %v540, %v740
    %v787 = vadd.f32 %v541, %v779
    %v788 = vadd.f32 %v542, %v781
    %v789 = vmul.f32 %v785, 0.5
    %v790 = vtanh.pop %v789
    %v791 = vadd.f32 %v790, 1.0
    %v792 = vmul.f32 %v791, 0.5
    %v793 = vmul.f32 %v786, 0.5
    %v794 = vtanh.pop %v793
    %v795 = vadd.f32 %v794, 1.0
    %v796 = vmul.f32 %v795, 0.5
    %v797 = vtanh.pop %v787
    %v798 = vmul.f32 %v788, 0.5
    %v799 = vtanh.pop %v798
    %v800 = vadd.f32 %v799, 1.0
    %v801 = vmul.f32 %v800, 0.5
    %v802 = vmul.f32 %v796, 0.0
    %v803 = vmul.f32 %v792, %v797
    %v804 = vadd.f32 %v802, %v803
    %v805 = vtanh.pop %v804
    %v806 = vmul.f32 %v801, %v805
    %s807 = smul.u32 1, 4
    %s808 = smul.addr %s807, 8
    %s809 = scalar_lea.vmem [#allocation2], %s808
    %v810 = vld [vmem:[%s809] sm:$0xff]
    %v811 = vld [vmem:[%s809 + $0x8] sm:$0xff]
    %v812 = vld [vmem:[%s809 + $0x10] sm:$0xff]
    %v813 = vld [vmem:[%s809 + $0x18] sm:$0xff]
    %v814 = vpack.c.bf16 %v806, %v806
    %815 = vmatprep.subr.bf16.mxu0 %v640
    %816 = vmatpush1.bf16.msra.mxu0 %v639
    %817 = vmatprep.subr.bf16.mxu0 %v644
    %818 = vmatpush1.bf16.msra.mxu0 %v643
    %819 = vmatprep.subr.bf16.mxu0 %v648
    %820 = vmatpush1.bf16.msra.mxu0 %v647
    %821 = vmatprep.subr.bf16.mxu0 %v652
    %822 = vmatpush1.bf16.msra.mxu0 %v651
    %823 = vmatprep.subr.bf16.mxu0 %v656
    %824 = vmatpush1.bf16.msra.mxu0 %v655
    %825 = vmatprep.subr.bf16.mxu0 %v660
    %826 = vmatpush1.bf16.msra.mxu0 %v659
    %827 = vmatprep.subr.bf16.mxu0 %v664
    %828 = vmatpush1.bf16.msra.mxu0 %v663
    %829 = vmatprep.subr.bf16.mxu0 %v668
    %830 = vmatpush1.bf16.msra.mxu0 %v667
    %831 = vmatprep.subr.bf16.mxu0 0
    %832 = vmatpush1.bf16.msra.mxu0 0
    %833 = vmatprep.subr.bf16.mxu0 0
    %834 = vmatpush1.bf16.msra.mxu0 0
    %835 = vmatprep.subr.bf16.mxu0 0
    %836 = vmatpush1.bf16.msra.mxu0 0
    %837 = vmatprep.subr.bf16.mxu0 0
    %838 = vmatpush1.bf16.msra.mxu0 0
    %839 = vmatprep.subr.bf16.mxu0 0
    %840 = vmatpush1.bf16.msra.mxu0 0
    %841 = vmatprep.subr.bf16.mxu0 0
    %842 = vmatpush1.bf16.msra.mxu0 0
    %843 = vmatprep.subr.bf16.mxu0 0
    %844 = vmatpush1.bf16.msra.mxu0 0
    %845 = vmatprep.subr.bf16.mxu0 0
    %846 = vmatpush1.bf16.msra.mxu0 0
    %847 = vmatprep.mubr.bf16.mxu0 0
    %848 = vmatmul.mubr.bf16.gmra.mrb[0].mxu0 %v814
    %v849 = vpop.f32.mrb[0].mxu0
    %v850 = vadd.f32 0.0, %v849
    %v851 = vpop.f32.mrb[0].mxu0
    %v852 = vadd.f32 0.0, %v851
    %v853 = vpop.f32.mrb[0].mxu0
    %v854 = vpop.f32.mrb[0].mxu0
    %855 = vdwg.mxu0
    %856 = vmatprep.subr.bf16.mxu0 %v642
    %857 = vmatpush1.bf16.msra.mxu0 %v641
    %858 = vmatprep.subr.bf16.mxu0 %v646
    %859 = vmatpush1.bf16.msra.mxu0 %v645
    %860 = vmatprep.subr.bf16.mxu0 %v650
    %861 = vmatpush1.bf16.msra.mxu0 %v649
    %862 = vmatprep.subr.bf16.mxu0 %v654
    %863 = vmatpush1.bf16.msra.mxu0 %v653
    %864 = vmatprep.subr.bf16.mxu0 %v658
    %865 = vmatpush1.bf16.msra.mxu0 %v657
    %866 = vmatprep.subr.bf16.mxu0 %v662
    %867 = vmatpush1.bf16.msra.mxu0 %v661
    %868 = vmatprep.subr.bf16.mxu0 %v666
    %869 = vmatpush1.bf16.msra.mxu0 %v665
    %870 = vmatprep.subr.bf16.mxu0 %v670
    %871 = vmatpush1.bf16.msra.mxu0 %v669
    %872 = vmatprep.subr.bf16.mxu0 0
    %873 = vmatpush1.bf16.msra.mxu0 0
    %874 = vmatprep.subr.bf16.mxu0 0
    %875 = vmatpush1.bf16.msra.mxu0 0
    %876 = vmatprep.subr.bf16.mxu0 0
    %877 = vmatpush1.bf16.msra.mxu0 0
    %878 = vmatprep.subr.bf16.mxu0 0
    %879 = vmatpush1.bf16.msra.mxu0 0
    %880 = vmatprep.subr.bf16.mxu0 0
    %881 = vmatpush1.bf16.msra.mxu0 0
    %882 = vmatprep.subr.bf16.mxu0 0
    %883 = vmatpush1.bf16.msra.mxu0 0
    %884 = vmatprep.subr.bf16.mxu0 0
    %885 = vmatpush1.bf16.msra.mxu0 0
    %886 = vmatprep.subr.bf16.mxu0 0
    %887 = vmatpush1.bf16.msra.mxu0 0
    %888 = vmatprep.mubr.bf16.mxu0 0
    %889 = vmatmul.mubr.bf16.gmra.mrb[0].mxu0 %v814
    %v890 = vpop.f32.mrb[0].mxu0
    %v891 = vadd.f32 0.0, %v890
    %v892 = vpop.f32.mrb[0].mxu0
    %v893 = vadd.f32 0.0, %v892
    %v894 = vpop.f32.mrb[0].mxu0
    %v895 = vpop.f32.mrb[0].mxu0
    %896 = vdwg.mxu0
    %v897 = vadd.f32 %v810, %v850
    %v898 = vadd.f32 %v811, %v852
    %v899 = vadd.f32 %v812, %v891
    %v900 = vadd.f32 %v813, %v893
    %v901 = vmul.f32 %v897, 0.5
    %v902 = vtanh.pop %v901
    %v903 = vadd.f32 %v902, 1.0
    %v904 = vmul.f32 %v903, 0.5
    %v905 = vmul.f32 %v898, 0.5
    %v906 = vtanh.pop %v905
    %v907 = vadd.f32 %v906, 1.0
    %v908 = vmul.f32 %v907, 0.5
    %v909 = vtanh.pop %v899
    %v910 = vmul.f32 %v900, 0.5
    %v911 = vtanh.pop %v910
    %v912 = vadd.f32 %v911, 1.0
    %v913 = vmul.f32 %v912, 0.5
    %v914 = vmul.f32 %v908, %v804
    %v915 = vmul.f32 %v904, %v909
    %v916 = vadd.f32 %v914, %v915
    %v917 = vtanh.pop %v916
    %v918 = vmul.f32 %v913, %v917
    %s919 = smul.u32 2, 4
    %s920 = smul.addr %s919, 8
    %s921 = scalar_lea.vmem [#allocation2], %s920
    %v922 = vld [vmem:[%s921] sm:$0xff]
    %v923 = vld [vmem:[%s921 + $0x8] sm:$0xff]
    %v924 = vld [vmem:[%s921 + $0x10] sm:$0xff]
    %v925 = vld [vmem:[%s921 + $0x18] sm:$0xff]
    %v926 = vpack.c.bf16 %v918, %v918
    %927 = vmatprep.subr.bf16.mxu0 %v640
    %928 = vmatpush1.bf16.msra.mxu0 %v639
    %929 = vmatprep.subr.bf16.mxu0 %v644
    %930 = vmatpush1.bf16.msra.mxu0 %v643
    %931 = vmatprep.subr.bf16.mxu0 %v648
    %932 = vmatpush1.bf16.msra.mxu0 %v647
    %933 = vmatprep.subr.bf16.mxu0 %v652
    %934 = vmatpush1.bf16.msra.mxu0 %v651
    %935 = vmatprep.subr.bf16.mxu0 %v656
    %936 = vmatpush1.bf16.msra.mxu0 %v655
    %937 = vmatprep.subr.bf16.mxu0 %v660
    %938 = vmatpush1.bf16.msra.mxu0 %v659
    %939 = vmatprep.subr.bf16.mxu0 %v664
    %940 = vmatpush1.bf16.msra.mxu0 %v663
    %941 = vmatprep.subr.bf16.mxu0 %v668
    %942 = vmatpush1.bf16.msra.mxu0 %v667
    %943 = vmatprep.subr.bf16.mxu0 0
    %944 = vmatpush1.bf16.msra.mxu0 0
    %945 = vmatprep.subr.bf16.mxu0 0
    %946 = vmatpush1.bf16.msra.mxu0 0
    %947 = vmatprep.subr.bf16.mxu0 0
    %948 = vmatpush1.bf16.msra.mxu0 0
    %949 = vmatprep.subr.bf16.mxu0 0
    %950 = vmatpush1.bf16.msra.mxu0 0
    %951 = vmatprep.subr.bf16.mxu0 0
    %952 = vmatpush1.bf16.msra.mxu0 0
    %953 = vmatprep.subr.bf16.mxu0 0
    %954 = vmatpush1.bf16.msra.mxu0 0
    %955 = vmatprep.subr.bf16.mxu0 0
    %956 = vmatpush1.bf16.msra.mxu0 0
    %957 = vmatprep.subr.bf16.mxu0 0
    %958 = vmatpush1.bf16.msra.mxu0 0
    %959 = vmatprep.mubr.bf16.mxu0 0
    %960 = vmatmul.mubr.bf16.gmra.mrb[0].mxu0 %v926
    %v961 = vpop.f32.mrb[0].mxu0
    %v962 = vadd.f32 0.0, %v961
    %v963 = vpop.f32.mrb[0].mxu0
    %v964 = vadd.f32 0.0, %v963
    %v965 = vpop.f32.mrb[0].mxu0
    %v966 = vpop.f32.mrb[0].mxu0
    %967 = vdwg.mxu0
    %968 = vmatprep.subr.bf16.mxu0 %v642
    %969 = vmatpush1.bf16.msra.mxu0 %v641
    %970 = vmatprep.subr.bf16.mxu0 %v646
    %971 = vmatpush1.bf16.msra.mxu0 %v645
    %972 = vmatprep.subr.bf16.mxu0 %v650
    %973 = vmatpush1.bf16.msra.mxu0 %v649
    %974 = vmatprep.subr.bf16.mxu0 %v654
    %975 = vmatpush1.bf16.msra.mxu0 %v653
    %976 = vmatprep.subr.bf16.mxu0 %v658
    %977 = vmatpush1.bf16.msra.mxu0 %v657
    %978 = vmatprep.subr.bf16.mxu0 %v662
    %979 = vmatpush1.bf16.msra.mxu0 %v661
    %980 = vmatprep.subr.bf16.mxu0 %v666
    %981 = vmatpush1.bf16.msra.mxu0 %v665
    %982 = vmatprep.subr.bf16.mxu0 %v670
    %983 = vmatpush1.bf16.msra.mxu0 %v669
    %984 = vmatprep.subr.bf16.mxu0 0
    %985 = vmatpush1.bf16.msra.mxu0 0
    %986 = vmatprep.subr.bf16.mxu0 0
    %987 = vmatpush1.bf16.msra.mxu0 0
    %988 = vmatprep.subr.bf16.mxu0 0
    %989 = vmatpush1.bf16.msra.mxu0 0
    %990 = vmatprep.subr.bf16.mxu0 0
    %991 = vmatpush1.bf16.msra.mxu0 0
    %992 = vmatprep.subr.bf16.mxu0 0
    %993 = vmatpush1.bf16.msra.mxu0 0
    %994 = vmatprep.subr.bf16.mxu0 0
    %995 = vmatpush1.bf16.msra.mxu0 0
    %996 = vmatprep.subr.bf16.mxu0 0
    %997 = vmatpush1.bf16.msra.mxu0 0
    %998 = vmatprep.subr.bf16.mxu0 0
    %999 = vmatpush1.bf16.msra.mxu0 0
    %1000 = vmatprep.mubr.bf16.mxu0 0
    %1001 = vmatmul.mubr.bf16.gmra.mrb[0].mxu0 %v926
    %v1002 = vpop.f32.mrb[0].mxu0
    %v1003 = vadd.f32 0.0, %v1002
    %v1004 = vpop.f32.mrb[0].mxu0
    %v1005 = vadd.f32 0.0, %v1004
    %v1006 = vpop.f32.mrb[0].mxu0
    %v1007 = vpop.f32.mrb[0].mxu0
    %1008 = vdwg.mxu0
    %v1009 = vadd.f32 %v922, %v962
    %v1010 = vadd.f32 %v923, %v964
    %v1011 = vadd.f32 %v924, %v1003
    %v1012 = vadd.f32 %v925, %v1005
    %v1013 = vmul.f32 %v1009, 0.5
    %v1014 = vtanh.pop %v1013
    %v1015 = vadd.f32 %v1014, 1.0
    %v1016 = vmul.f32 %v1015, 0.5
    %v1017 = vmul.f32 %v1010, 0.5
    %v1018 = vtanh.pop %v1017
    %v1019 = vadd.f32 %v1018, 1.0
    %v1020 = vmul.f32 %v1019, 0.5
    %v1021 = vtanh.pop %v1011
    %v1022 = vmul.f32 %v1012, 0.5
    %v1023 = vtanh.pop %v1022
    %v1024 = vadd.f32 %v1023, 1.0
    %v1025 = vmul.f32 %v1024, 0.5
    %v1026 = vmul.f32 %v1020, %v916
    %v1027 = vmul.f32 %v1016, %v1021
    %v1028 = vadd.f32 %v1026, %v1027
    %v1029 = vtanh.pop %v1028
    %v1030 = vmul.f32 %v1025, %v1029
    %s1031 = smul.u32 3, 4
    %s1032 = smul.addr %s1031, 8
    %s1033 = scalar_lea.vmem [#allocation2], %s1032
    %v1034 = vld [vmem:[%s1033] sm:$0xff]
    %v1035 = vld [vmem:[%s1033 + $0x8] sm:$0xff]
    %v1036 = vld [vmem:[%s1033 + $0x10] sm:$0xff]
    %v1037 = vld [vmem:[%s1033 + $0x18] sm:$0xff]
    %v1038 = vpack.c.bf16 %v1030, %v1030
    %1039 = vmatprep.subr.bf16.mxu0 %v640
    %1040 = vmatpush1.bf16.msra.mxu0 %v639
    %1041 = vmatprep.subr.bf16.mxu0 %v644
    %1042 = vmatpush1.bf16.msra.mxu0 %v643
    %1043 = vmatprep.subr.bf16.mxu0 %v648
    %1044 = vmatpush1.bf16.msra.mxu0 %v647
    %1045 = vmatprep.subr.bf16.mxu0 %v652
    %1046 = vmatpush1.bf16.msra.mxu0 %v651
    %1047 = vmatprep.subr.bf16.mxu0 %v656
    %1048 = vmatpush1.bf16.msra.mxu0 %v655
    %1049 = vmatprep.subr.bf16.mxu0 %v660
    %1050 = vmatpush1.bf16.msra.mxu0 %v659
    %1051 = vmatprep.subr.bf16.mxu0 %v664
    %1052 = vmatpush1.bf16.msra.mxu0 %v663
    %1053 = vmatprep.subr.bf16.mxu0 %v668
    %1054 = vmatpush1.bf16.msra.mxu0 %v667
    %1055 = vmatprep.subr.bf16.mxu0 0
    %1056 = vmatpush1.bf16.msra.mxu0 0
    %1057 = vmatprep.subr.bf16.mxu0 0
    %1058 = vmatpush1.bf16.msra.mxu0 0
    %1059 = vmatprep.subr.bf16.mxu0 0
    %1060 = vmatpush1.bf16.msra.mxu0 0
    %1061 = vmatprep.subr.bf16.mxu0 0
    %1062 = vmatpush1.bf16.msra.mxu0 0
    %1063 = vmatprep.subr.bf16.mxu0 0
    %1064 = vmatpush1.bf16.msra.mxu0 0
    %1065 = vmatprep.subr.bf16.mxu0 0
    %1066 = vmatpush1.bf16.msra.mxu0 0
    %1067 = vmatprep.subr.bf16.mxu0 0
    %1068 = vmatpush1.bf16.msra.mxu0 0
    %1069 = vmatprep.subr.bf16.mxu0 0
    %1070 = vmatpush1.bf16.msra.mxu0 0
    %1071 = vmatprep.mubr.bf16.mxu0 0
    %1072 = vmatmul.mubr.bf16.gmra.mrb[0].mxu0 %v1038
    %v1073 = vpop.f32.mrb[0].mxu0
    %v1074 = vadd.f32 0.0, %v1073
    %v1075 = vpop.f32.mrb[0].mxu0
    %v1076 = vadd.f32 0.0, %v1075
    %v1077 = vpop.f32.mrb[0].mxu0
    %v1078 = vpop.f32.mrb[0].mxu0
    %1079 = vdwg.mxu0
    %1080 = vmatprep.subr.bf16.mxu0 %v642
    %1081 = vmatpush1.bf16.msra.mxu0 %v641
    %1082 = vmatprep.subr.bf16.mxu0 %v646
    %1083 = vmatpush1.bf16.msra.mxu0 %v645
    %1084 = vmatprep.subr.bf16.mxu0 %v650
    %1085 = vmatpush1.bf16.msra.mxu0 %v649
    %1086 = vmatprep.subr.bf16.mxu0 %v654
    %1087 = vmatpush1.bf16.msra.mxu0 %v653
    %1088 = vmatprep.subr.bf16.mxu0 %v658
    %1089 = vmatpush1.bf16.msra.mxu0 %v657
    %1090 = vmatprep.subr.bf16.mxu0 %v662
    %1091 = vmatpush1.bf16.msra.mxu0 %v661
    %1092 = vmatprep.subr.bf16.mxu0 %v666
    %1093 = vmatpush1.bf16.msra.mxu0 %v665
    %1094 = vmatprep.subr.bf16.mxu0 %v670
    %1095 = vmatpush1.bf16.msra.mxu0 %v669
    %1096 = vmatprep.subr.bf16.mxu0 0
    %1097 = vmatpush1.bf16.msra.mxu0 0
    %1098 = vmatprep.subr.bf16.mxu0 0
    %1099 = vmatpush1.bf16.msra.mxu0 0
    %1100 = vmatprep.subr.bf16.mxu0 0
    %1101 = vmatpush1.bf16.msra.mxu0 0
    %1102 = vmatprep.subr.bf16.mxu0 0
    %1103 = vmatpush1.bf16.msra.mxu0 0
    %1104 = vmatprep.subr.bf16.mxu0 0
    %1105 = vmatpush1.bf16.msra.mxu0 0
    %1106 = vmatprep.subr.bf16.mxu0 0
    %1107 = vmatpush1.bf16.msra.mxu0 0
    %1108 = vmatprep.subr.bf16.mxu0 0
    %1109 = vmatpush1.bf16.msra.mxu0 0
    %1110 = vmatprep.subr.bf16.mxu0 0
    %1111 = vmatpush1.bf16.msra.mxu0 0
    %1112 = vmatprep.mubr.bf16.mxu0 0
    %1113 = vmatmul.mubr.bf16.gmra.mrb[0].mxu0 %v1038
    %v1114 = vpop.f32.mrb[0].mxu0
    %v1115 = vadd.f32 0.0, %v1114
    %v1116 = vpop.f32.mrb[0].mxu0
    %v1117 = vadd.f32 0.0, %v1116
    %v1118 = vpop.f32.mrb[0].mxu0
    %v1119 = vpop.f32.mrb[0].mxu0
    %1120 = vdwg.mxu0
    %v1121 = vadd.f32 %v1034, %v1074
    %v1122 = vadd.f32 %v1035, %v1076
    %v1123 = vadd.f32 %v1036, %v1115
    %v1124 = vadd.f32 %v1037, %v1117
    %v1125 = vmul.f32 %v1121, 0.5
    %v1126 = vtanh.pop %v1125
    %v1127 = vadd.f32 %v1126, 1.0
    %v1128 = vmul.f32 %v1127, 0.5
    %v1129 = vmul.f32 %v1122, 0.5
    %v1130 = vtanh.pop %v1129
    %v1131 = vadd.f32 %v1130, 1.0
    %v1132 = vmul.f32 %v1131, 0.5
    %v1133 = vtanh.pop %v1123
    %v1134 = vmul.f32 %v1124, 0.5
    %v1135 = vtanh.pop %v1134
    %v1136 = vadd.f32 %v1135, 1.0
    %v1137 = vmul.f32 %v1136, 0.5
    %v1138 = vmul.f32 %v1132, %v1028
    %v1139 = vmul.f32 %v1128, %v1133
    %v1140 = vadd.f32 %v1138, %v1139
    %v1141 = vtanh.pop %v1140
    %v1142 = vmul.f32 %v1137, %v1141
    %s1143 = smul.u32 4, 4
    %s1144 = smul.addr %s1143, 8
    %s1145 = scalar_lea.vmem [#allocation2], %s1144
    %v1146 = vld [vmem:[%s1145] sm:$0xff]
    %v1147 = vld [vmem:[%s1145 + $0x8] sm:$0xff]
    %v1148 = vld [vmem:[%s1145 + $0x10] sm:$0xff]
    %v1149 = vld [vmem:[%s1145 + $0x18] sm:$0xff]
    %v1150 = vpack.c.bf16 %v1142, %v1142
    %1151 = vmatprep.subr.bf16.mxu0 %v640
    %1152 = vmatpush1.bf16.msra.mxu0 %v639
    %1153 = vmatprep.subr.bf16.mxu0 %v644
    %1154 = vmatpush1.bf16.msra.mxu0 %v643
    %1155 = vmatprep.subr.bf16.mxu0 %v648
    %1156 = vmatpush1.bf16.msra.mxu0 %v647
    %1157 = vmatprep.subr.bf16.mxu0 %v652
    %1158 = vmatpush1.bf16.msra.mxu0 %v651
    %1159 = vmatprep.subr.bf16.mxu0 %v656
    %1160 = vmatpush1.bf16.msra.mxu0 %v655
    %1161 = vmatprep.subr.bf16.mxu0 %v660
    %1162 = vmatpush1.bf16.msra.mxu0 %v659
    %1163 = vmatprep.subr.bf16.mxu0 %v664
    %1164 = vmatpush1.bf16.msra.mxu0 %v663
    %1165 = vmatprep.subr.bf16.mxu0 %v668
    %1166 = vmatpush1.bf16.msra.mxu0 %v667
    %1167 = vmatprep.subr.bf16.mxu0 0
    %1168 = vmatpush1.bf16.msra.mxu0 0
    %1169 = vmatprep.subr.bf16.mxu0 0
    %1170 = vmatpush1.bf16.msra.mxu0 0
    %1171 = vmatprep.subr.bf16.mxu0 0
    %1172 = vmatpush1.bf16.msra.mxu0 0
    %1173 = vmatprep.subr.bf16.mxu0 0
    %1174 = vmatpush1.bf16.msra.mxu0 0
    %1175 = vmatprep.subr.bf16.mxu0 0
    %1176 = vmatpush1.bf16.msra.mxu0 0
    %1177 = vmatprep.subr.bf16.mxu0 0
    %1178 = vmatpush1.bf16.msra.mxu0 0
    %1179 = vmatprep.subr.bf16.mxu0 0
    %1180 = vmatpush1.bf16.msra.mxu0 0
    %1181 = vmatprep.subr.bf16.mxu0 0
    %1182 = vmatpush1.bf16.msra.mxu0 0
    %1183 = vmatprep.mubr.bf16.mxu0 0
    %1184 = vmatmul.mubr.bf16.gmra.mrb[0].mxu0 %v1150
    %v1185 = vpop.f32.mrb[0].mxu0
    %v1186 = vadd.f32 0.0, %v1185
    %v1187 = vpop.f32.mrb[0].mxu0
    %v1188 = vadd.f32 0.0, %v1187
    %v1189 = vpop.f32.mrb[0].mxu0
    %v1190 = vpop.f32.mrb[0].mxu0
    %1191 = vdwg.mxu0
    %1192 = vmatprep.subr.bf16.mxu0 %v642
    %1193 = vmatpush1.bf16.msra.mxu0 %v641
    %1194 = vmatprep.subr.bf16.mxu0 %v646
    %1195 = vmatpush1.bf16.msra.mxu0 %v645
    %1196 = vmatprep.subr.bf16.mxu0 %v650
    %1197 = vmatpush1.bf16.msra.mxu0 %v649
    %1198 = vmatprep.subr.bf16.mxu0 %v654
    %1199 = vmatpush1.bf16.msra.mxu0 %v653
    %1200 = vmatprep.subr.bf16.mxu0 %v658
    %1201 = vmatpush1.bf16.msra.mxu0 %v657
    %1202 = vmatprep.subr.bf16.mxu0 %v662
    %1203 = vmatpush1.bf16.msra.mxu0 %v661
    %1204 = vmatprep.subr.bf16.mxu0 %v666
    %1205 = vmatpush1.bf16.msra.mxu0 %v665
    %1206 = vmatprep.subr.bf16.mxu0 %v670
    %1207 = vmatpush1.bf16.msra.mxu0 %v669
    %1208 = vmatprep.subr.bf16.mxu0 0
    %1209 = vmatpush1.bf16.msra.mxu0 0
    %1210 = vmatprep.subr.bf16.mxu0 0
    %1211 = vmatpush1.bf16.msra.mxu0 0
    %1212 = vmatprep.subr.bf16.mxu0 0
    %1213 = vmatpush1.bf16.msra.mxu0 0
    %1214 = vmatprep.subr.bf16.mxu0 0
    %1215 = vmatpush1.bf16.msra.mxu0 0
    %1216 = vmatprep.subr.bf16.mxu0 0
    %1217 = vmatpush1.bf16.msra.mxu0 0
    %1218 = vmatprep.subr.bf16.mxu0 0
    %1219 = vmatpush1.bf16.msra.mxu0 0
    %1220 = vmatprep.subr.bf16.mxu0 0
    %1221 = vmatpush1.bf16.msra.mxu0 0
    %1222 = vmatprep.subr.bf16.mxu0 0
    %1223 = vmatpush1.bf16.msra.mxu0 0
    %1224 = vmatprep.mubr.bf16.mxu0 0
    %1225 = vmatmul.mubr.bf16.gmra.mrb[0].mxu0 %v1150
    %v1226 = vpop.f32.mrb[0].mxu0
    %v1227 = vadd.f32 0.0, %v1226
    %v1228 = vpop.f32.mrb[0].mxu0
    %v1229 = vadd.f32 0.0, %v1228
    %v1230 = vpop.f32.mrb[0].mxu0
    %v1231 = vpop.f32.mrb[0].mxu0
    %1232 = vdwg.mxu0
    %v1233 = vadd.f32 %v1146, %v1186
    %v1234 = vadd.f32 %v1147, %v1188
    %v1235 = vadd.f32 %v1148, %v1227
    %v1236 = vadd.f32 %v1149, %v1229
    %v1237 = vmul.f32 %v1233, 0.5
    %v1238 = vtanh.pop %v1237
    %v1239 = vadd.f32 %v1238, 1.0
    %v1240 = vmul.f32 %v1239, 0.5
    %v1241 = vmul.f32 %v1234, 0.5
    %v1242 = vtanh.pop %v1241
    %v1243 = vadd.f32 %v1242, 1.0
    %v1244 = vmul.f32 %v1243, 0.5
    %v1245 = vtanh.pop %v1235
    %v1246 = vmul.f32 %v1236, 0.5
    %v1247 = vtanh.pop %v1246
    %v1248 = vadd.f32 %v1247, 1.0
    %v1249 = vmul.f32 %v1248, 0.5
    %v1250 = vmul.f32 %v1244, %v1140
    %v1251 = vmul.f32 %v1240, %v1245
    %v1252 = vadd.f32 %v1250, %v1251
    %v1253 = vtanh.pop %v1252
    %v1254 = vmul.f32 %v1249, %v1253
    %s1255 = smul.u32 5, 4
    %s1256 = smul.addr %s1255, 8
    %s1257 = scalar_lea.vmem [#allocation2], %s1256
    %v1258 = vld [vmem:[%s1257] sm:$0xff]
    %v1259 = vld [vmem:[%s1257 + $0x8] sm:$0xff]
    %v1260 = vld [vmem:[%s1257 + $0x10] sm:$0xff]
    %v1261 = vld [vmem:[%s1257 + $0x18] sm:$0xff]
    %v1262 = vpack.c.bf16 %v1254, %v1254
    %1263 = vmatprep.subr.bf16.mxu0 %v640
    %1264 = vmatpush1.bf16.msra.mxu0 %v639
    %1265 = vmatprep.subr.bf16.mxu0 %v644
    %1266 = vmatpush1.bf16.msra.mxu0 %v643
    %1267 = vmatprep.subr.bf16.mxu0 %v648
    %1268 = vmatpush1.bf16.msra.mxu0 %v647
    %1269 = vmatprep.subr.bf16.mxu0 %v652
    %1270 = vmatpush1.bf16.msra.mxu0 %v651
    %1271 = vmatprep.subr.bf16.mxu0 %v656
    %1272 = vmatpush1.bf16.msra.mxu0 %v655
    %1273 = vmatprep.subr.bf16.mxu0 %v660
    %1274 = vmatpush1.bf16.msra.mxu0 %v659
    %1275 = vmatprep.subr.bf16.mxu0 %v664
    %1276 = vmatpush1.bf16.msra.mxu0 %v663
    %1277 = vmatprep.subr.bf16.mxu0 %v668
    %1278 = vmatpush1.bf16.msra.mxu0 %v667
    %1279 = vmatprep.subr.bf16.mxu0 0
    %1280 = vmatpush1.bf16.msra.mxu0 0
    %1281 = vmatprep.subr.bf16.mxu0 0
    %1282 = vmatpush1.bf16.msra.mxu0 0
    %1283 = vmatprep.subr.bf16.mxu0 0
    %1284 = vmatpush1.bf16.msra.mxu0 0
    %1285 = vmatprep.subr.bf16.mxu0 0
    %1286 = vmatpush1.bf16.msra.mxu0 0
    %1287 = vmatprep.subr.bf16.mxu0 0
    %1288 = vmatpush1.bf16.msra.mxu0 0
    %1289 = vmatprep.subr.bf16.mxu0 0
    %1290 = vmatpush1.bf16.msra.mxu0 0
    %1291 = vmatprep.subr.bf16.mxu0 0
    %1292 = vmatpush1.bf16.msra.mxu0 0
    %1293 = vmatprep.subr.bf16.mxu0 0
    %1294 = vmatpush1.bf16.msra.mxu0 0
    %1295 = vmatprep.mubr.bf16.mxu0 0
    %1296 = vmatmul.mubr.bf16.gmra.mrb[0].mxu0 %v1262
    %v1297 = vpop.f32.mrb[0].mxu0
    %v1298 = vadd.f32 0.0, %v1297
    %v1299 = vpop.f32.mrb[0].mxu0
    %v1300 = vadd.f32 0.0, %v1299
    %v1301 = vpop.f32.mrb[0].mxu0
    %v1302 = vpop.f32.mrb[0].mxu0
    %1303 = vdwg.mxu0
    %1304 = vmatprep.subr.bf16.mxu0 %v642
    %1305 = vmatpush1.bf16.msra.mxu0 %v641
    %1306 = vmatprep.subr.bf16.mxu0 %v646
    %1307 = vmatpush1.bf16.msra.mxu0 %v645
    %1308 = vmatprep.subr.bf16.mxu0 %v650
    %1309 = vmatpush1.bf16.msra.mxu0 %v649
    %1310 = vmatprep.subr.bf16.mxu0 %v654
    %1311 = vmatpush1.bf16.msra.mxu0 %v653
    %1312 = vmatprep.subr.bf16.mxu0 %v658
    %1313 = vmatpush1.bf16.msra.mxu0 %v657
    %1314 = vmatprep.subr.bf16.mxu0 %v662
    %1315 = vmatpush1.bf16.msra.mxu0 %v661
    %1316 = vmatprep.subr.bf16.mxu0 %v666
    %1317 = vmatpush1.bf16.msra.mxu0 %v665
    %1318 = vmatprep.subr.bf16.mxu0 %v670
    %1319 = vmatpush1.bf16.msra.mxu0 %v669
    %1320 = vmatprep.subr.bf16.mxu0 0
    %1321 = vmatpush1.bf16.msra.mxu0 0
    %1322 = vmatprep.subr.bf16.mxu0 0
    %1323 = vmatpush1.bf16.msra.mxu0 0
    %1324 = vmatprep.subr.bf16.mxu0 0
    %1325 = vmatpush1.bf16.msra.mxu0 0
    %1326 = vmatprep.subr.bf16.mxu0 0
    %1327 = vmatpush1.bf16.msra.mxu0 0
    %1328 = vmatprep.subr.bf16.mxu0 0
    %1329 = vmatpush1.bf16.msra.mxu0 0
    %1330 = vmatprep.subr.bf16.mxu0 0
    %1331 = vmatpush1.bf16.msra.mxu0 0
    %1332 = vmatprep.subr.bf16.mxu0 0
    %1333 = vmatpush1.bf16.msra.mxu0 0
    %1334 = vmatprep.subr.bf16.mxu0 0
    %1335 = vmatpush1.bf16.msra.mxu0 0
    %1336 = vmatprep.mubr.bf16.mxu0 0
    %1337 = vmatmul.mubr.bf16.gmra.mrb[0].mxu0 %v1262
    %v1338 = vpop.f32.mrb[0].mxu0
    %v1339 = vadd.f32 0.0, %v1338
    %v1340 = vpop.f32.mrb[0].mxu0
    %v1341 = vadd.f32 0.0, %v1340
    %v1342 = vpop.f32.mrb[0].mxu0
    %v1343 = vpop.f32.mrb[0].mxu0
    %1344 = vdwg.mxu0
    %v1345 = vadd.f32 %v1258, %v1298
    %v1346 = vadd.f32 %v1259, %v1300
    %v1347 = vadd.f32 %v1260, %v1339
    %v1348 = vadd.f32 %v1261, %v1341
    %v1349 = vmul.f32 %v1345, 0.5
    %v1350 = vtanh.pop %v1349
    %v1351 = vadd.f32 %v1350, 1.0
    %v1352 = vmul.f32 %v1351, 0.5
    %v1353 = vmul.f32 %v1346, 0.5
    %v1354 = vtanh.pop %v1353
    %v1355 = vadd.f32 %v1354, 1.0
    %v1356 = vmul.f32 %v1355, 0.5
    %v1357 = vtanh.pop %v1347
    %v1358 = vmul.f32 %v1348, 0.5
    %v1359 = vtanh.pop %v1358
    %v1360 = vadd.f32 %v1359, 1.0
    %v1361 = vmul.f32 %v1360, 0.5
    %v1362 = vmul.f32 %v1356, %v1252
    %v1363 = vmul.f32 %v1352, %v1357
    %v1364 = vadd.f32 %v1362, %v1363
    %v1365 = vtanh.pop %v1364
    %v1366 = vmul.f32 %v1361, %v1365
    %s1367 = smul.u32 6, 4
    %s1368 = smul.addr %s1367, 8
    %s1369 = scalar_lea.vmem [#allocation2], %s1368
    %v1370 = vld [vmem:[%s1369] sm:$0xff]
    %v1371 = vld [vmem:[%s1369 + $0x8] sm:$0xff]
    %v1372 = vld [vmem:[%s1369 + $0x10] sm:$0xff]
    %v1373 = vld [vmem:[%s1369 + $0x18] sm:$0xff]
    %v1374 = vpack.c.bf16 %v1366, %v1366
    %1375 = vmatprep.subr.bf16.mxu0 %v640
    %1376 = vmatpush1.bf16.msra.mxu0 %v639
    %1377 = vmatprep.subr.bf16.mxu0 %v644
    %1378 = vmatpush1.bf16.msra.mxu0 %v643
    %1379 = vmatprep.subr.bf16.mxu0 %v648
    %1380 = vmatpush1.bf16.msra.mxu0 %v647
    %1381 = vmatprep.subr.bf16.mxu0 %v652
    %1382 = vmatpush1.bf16.msra.mxu0 %v651
    %1383 = vmatprep.subr.bf16.mxu0 %v656
    %1384 = vmatpush1.bf16.msra.mxu0 %v655
    %1385 = vmatprep.subr.bf16.mxu0 %v660
    %1386 = vmatpush1.bf16.msra.mxu0 %v659
    %1387 = vmatprep.subr.bf16.mxu0 %v664
    %1388 = vmatpush1.bf16.msra.mxu0 %v663
    %1389 = vmatprep.subr.bf16.mxu0 %v668
    %1390 = vmatpush1.bf16.msra.mxu0 %v667
    %1391 = vmatprep.subr.bf16.mxu0 0
    %1392 = vmatpush1.bf16.msra.mxu0 0
    %1393 = vmatprep.subr.bf16.mxu0 0
    %1394 = vmatpush1.bf16.msra.mxu0 0
    %1395 = vmatprep.subr.bf16.mxu0 0
    %1396 = vmatpush1.bf16.msra.mxu0 0
    %1397 = vmatprep.subr.bf16.mxu0 0
    %1398 = vmatpush1.bf16.msra.mxu0 0
    %1399 = vmatprep.subr.bf16.mxu0 0
    %1400 = vmatpush1.bf16.msra.mxu0 0
    %1401 = vmatprep.subr.bf16.mxu0 0
    %1402 = vmatpush1.bf16.msra.mxu0 0
    %1403 = vmatprep.subr.bf16.mxu0 0
    %1404 = vmatpush1.bf16.msra.mxu0 0
    %1405 = vmatprep.subr.bf16.mxu0 0
    %1406 = vmatpush1.bf16.msra.mxu0 0
    %1407 = vmatprep.mubr.bf16.mxu0 0
    %1408 = vmatmul.mubr.bf16.gmra.mrb[0].mxu0 %v1374
    %v1409 = vpop.f32.mrb[0].mxu0
    %v1410 = vadd.f32 0.0, %v1409
    %v1411 = vpop.f32.mrb[0].mxu0
    %v1412 = vadd.f32 0.0, %v1411
    %v1413 = vpop.f32.mrb[0].mxu0
    %v1414 = vpop.f32.mrb[0].mxu0
    %1415 = vdwg.mxu0
    %1416 = vmatprep.subr.bf16.mxu0 %v642
    %1417 = vmatpush1.bf16.msra.mxu0 %v641
    %1418 = vmatprep.subr.bf16.mxu0 %v646
    %1419 = vmatpush1.bf16.msra.mxu0 %v645
    %1420 = vmatprep.subr.bf16.mxu0 %v650
    %1421 = vmatpush1.bf16.msra.mxu0 %v649
    %1422 = vmatprep.subr.bf16.mxu0 %v654
    %1423 = vmatpush1.bf16.msra.mxu0 %v653
    %1424 = vmatprep.subr.bf16.mxu0 %v658
    %1425 = vmatpush1.bf16.msra.mxu0 %v657
    %1426 = vmatprep.subr.bf16.mxu0 %v662
    %1427 = vmatpush1.bf16.msra.mxu0 %v661
    %1428 = vmatprep.subr.bf16.mxu0 %v666
    %1429 = vmatpush1.bf16.msra.mxu0 %v665
    %1430 = vmatprep.subr.bf16.mxu0 %v670
    %1431 = vmatpush1.bf16.msra.mxu0 %v669
    %1432 = vmatprep.subr.bf16.mxu0 0
    %1433 = vmatpush1.bf16.msra.mxu0 0
    %1434 = vmatprep.subr.bf16.mxu0 0
    %1435 = vmatpush1.bf16.msra.mxu0 0
    %1436 = vmatprep.subr.bf16.mxu0 0
    %1437 = vmatpush1.bf16.msra.mxu0 0
    %1438 = vmatprep.subr.bf16.mxu0 0
    %1439 = vmatpush1.bf16.msra.mxu0 0
    %1440 = vmatprep.subr.bf16.mxu0 0
    %1441 = vmatpush1.bf16.msra.mxu0 0
    %1442 = vmatprep.subr.bf16.mxu0 0
    %1443 = vmatpush1.bf16.msra.mxu0 0
    %1444 = vmatprep.subr.bf16.mxu0 0
    %1445 = vmatpush1.bf16.msra.mxu0 0
    %1446 = vmatprep.subr.bf16.mxu0 0
    %1447 = vmatpush1.bf16.msra.mxu0 0
    %1448 = vmatprep.mubr.bf16.mxu0 0
    %1449 = vmatmul.mubr.bf16.gmra.mrb[0].mxu0 %v1374
    %v1450 = vpop.f32.mrb[0].mxu0
    %v1451 = vadd.f32 0.0, %v1450
    %v1452 = vpop.f32.mrb[0].mxu0
    %v1453 = vadd.f32 0.0, %v1452
    %v1454 = vpop.f32.mrb[0].mxu0
    %v1455 = vpop.f32.mrb[0].mxu0
    %1456 = vdwg.mxu0
    %v1457 = vadd.f32 %v1370, %v1410
    %v1458 = vadd.f32 %v1371, %v1412
    %v1459 = vadd.f32 %v1372, %v1451
    %v1460 = vadd.f32 %v1373, %v1453
    %v1461 = vmul.f32 %v1457, 0.5
    %v1462 = vtanh.pop %v1461
    %v1463 = vadd.f32 %v1462, 1.0
    %v1464 = vmul.f32 %v1463, 0.5
    %v1465 = vmul.f32 %v1458, 0.5
    %v1466 = vtanh.pop %v1465
    %v1467 = vadd.f32 %v1466, 1.0
    %v1468 = vmul.f32 %v1467, 0.5
    %v1469 = vtanh.pop %v1459
    %v1470 = vmul.f32 %v1460, 0.5
    %v1471 = vtanh.pop %v1470
    %v1472 = vadd.f32 %v1471, 1.0
    %v1473 = vmul.f32 %v1472, 0.5
    %v1474 = vmul.f32 %v1468, %v1364
    %v1475 = vmul.f32 %v1464, %v1469
    %v1476 = vadd.f32 %v1474, %v1475
    %v1477 = vtanh.pop %v1476
    %v1478 = vmul.f32 %v1473, %v1477
    %s1479 = smul.u32 7, 4
    %s1480 = smul.addr %s1479, 8
    %s1481 = scalar_lea.vmem [#allocation2], %s1480
    %v1482 = vld [vmem:[%s1481] sm:$0xff]
    %v1483 = vld [vmem:[%s1481 + $0x8] sm:$0xff]
    %v1484 = vld [vmem:[%s1481 + $0x10] sm:$0xff]
    %v1485 = vld [vmem:[%s1481 + $0x18] sm:$0xff]
    %v1486 = vpack.c.bf16 %v1478, %v1478
    %1487 = vmatprep.subr.bf16.mxu0 %v640
    %1488 = vmatpush1.bf16.msra.mxu0 %v639
    %1489 = vmatprep.subr.bf16.mxu0 %v644
    %1490 = vmatpush1.bf16.msra.mxu0 %v643
    %1491 = vmatprep.subr.bf16.mxu0 %v648
    %1492 = vmatpush1.bf16.msra.mxu0 %v647
    %1493 = vmatprep.subr.bf16.mxu0 %v652
    %1494 = vmatpush1.bf16.msra.mxu0 %v651
    %1495 = vmatprep.subr.bf16.mxu0 %v656
    %1496 = vmatpush1.bf16.msra.mxu0 %v655
    %1497 = vmatprep.subr.bf16.mxu0 %v660
    %1498 = vmatpush1.bf16.msra.mxu0 %v659
    %1499 = vmatprep.subr.bf16.mxu0 %v664
    %1500 = vmatpush1.bf16.msra.mxu0 %v663
    %1501 = vmatprep.subr.bf16.mxu0 %v668
    %1502 = vmatpush1.bf16.msra.mxu0 %v667
    %1503 = vmatprep.subr.bf16.mxu0 0
    %1504 = vmatpush1.bf16.msra.mxu0 0
    %1505 = vmatprep.subr.bf16.mxu0 0
    %1506 = vmatpush1.bf16.msra.mxu0 0
    %1507 = vmatprep.subr.bf16.mxu0 0
    %1508 = vmatpush1.bf16.msra.mxu0 0
    %1509 = vmatprep.subr.bf16.mxu0 0
    %1510 = vmatpush1.bf16.msra.mxu0 0
    %1511 = vmatprep.subr.bf16.mxu0 0
    %1512 = vmatpush1.bf16.msra.mxu0 0
    %1513 = vmatprep.subr.bf16.mxu0 0
    %1514 = vmatpush1.bf16.msra.mxu0 0
    %1515 = vmatprep.subr.bf16.mxu0 0
    %1516 = vmatpush1.bf16.msra.mxu0 0
    %1517 = vmatprep.subr.bf16.mxu0 0
    %1518 = vmatpush1.bf16.msra.mxu0 0
    %1519 = vmatprep.mubr.bf16.mxu0 0
    %1520 = vmatmul.mubr.bf16.gmra.mrb[0].mxu0 %v1486
    %v1521 = vpop.f32.mrb[0].mxu0
    %v1522 = vadd.f32 0.0, %v1521
    %v1523 = vpop.f32.mrb[0].mxu0
    %v1524 = vadd.f32 0.0, %v1523
    %v1525 = vpop.f32.mrb[0].mxu0
    %v1526 = vpop.f32.mrb[0].mxu0
    %1527 = vdwg.mxu0
    %1528 = vmatprep.subr.bf16.mxu0 %v642
    %1529 = vmatpush1.bf16.msra.mxu0 %v641
    %1530 = vmatprep.subr.bf16.mxu0 %v646
    %1531 = vmatpush1.bf16.msra.mxu0 %v645
    %1532 = vmatprep.subr.bf16.mxu0 %v650
    %1533 = vmatpush1.bf16.msra.mxu0 %v649
    %1534 = vmatprep.subr.bf16.mxu0 %v654
    %1535 = vmatpush1.bf16.msra.mxu0 %v653
    %1536 = vmatprep.subr.bf16.mxu0 %v658
    %1537 = vmatpush1.bf16.msra.mxu0 %v657
    %1538 = vmatprep.subr.bf16.mxu0 %v662
    %1539 = vmatpush1.bf16.msra.mxu0 %v661
    %1540 = vmatprep.subr.bf16.mxu0 %v666
    %1541 = vmatpush1.bf16.msra.mxu0 %v665
    %1542 = vmatprep.subr.bf16.mxu0 %v670
    %1543 = vmatpush1.bf16.msra.mxu0 %v669
    %1544 = vmatprep.subr.bf16.mxu0 0
    %1545 = vmatpush1.bf16.msra.mxu0 0
    %1546 = vmatprep.subr.bf16.mxu0 0
    %1547 = vmatpush1.bf16.msra.mxu0 0
    %1548 = vmatprep.subr.bf16.mxu0 0
    %1549 = vmatpush1.bf16.msra.mxu0 0
    %1550 = vmatprep.subr.bf16.mxu0 0
    %1551 = vmatpush1.bf16.msra.mxu0 0
    %1552 = vmatprep.subr.bf16.mxu0 0
    %1553 = vmatpush1.bf16.msra.mxu0 0
    %1554 = vmatprep.subr.bf16.mxu0 0
    %1555 = vmatpush1.bf16.msra.mxu0 0
    %1556 = vmatprep.subr.bf16.mxu0 0
    %1557 = vmatpush1.bf16.msra.mxu0 0
    %1558 = vmatprep.subr.bf16.mxu0 0
    %1559 = vmatpush1.bf16.msra.mxu0 0
    %1560 = vmatprep.mubr.bf16.mxu0 0
    %1561 = vmatmul.mubr.bf16.gmra.mrb[0].mxu0 %v1486
    %v1562 = vpop.f32.mrb[0].mxu0
    %v1563 = vadd.f32 0.0, %v1562
    %v1564 = vpop.f32.mrb[0].mxu0
    %v1565 = vadd.f32 0.0, %v1564
    %v1566 = vpop.f32.mrb[0].mxu0
    %v1567 = vpop.f32.mrb[0].mxu0
    %1568 = vdwg.mxu0
    %v1569 = vadd.f32 %v1482, %v1522
    %v1570 = vadd.f32 %v1483, %v1524
    %v1571 = vadd.f32 %v1484, %v1563
    %v1572 = vadd.f32 %v1485, %v1565
    %v1573 = vmul.f32 %v1569, 0.5
    %v1574 = vtanh.pop %v1573
    %v1575 = vadd.f32 %v1574, 1.0
    %v1576 = vmul.f32 %v1575, 0.5
    %v1577 = vmul.f32 %v1570, 0.5
    %v1578 = vtanh.pop %v1577
    %v1579 = vadd.f32 %v1578, 1.0
    %v1580 = vmul.f32 %v1579, 0.5
    %v1581 = vtanh.pop %v1571
    %v1582 = vmul.f32 %v1572, 0.5
    %v1583 = vtanh.pop %v1582
    %v1584 = vadd.f32 %v1583, 1.0
    %v1585 = vmul.f32 %v1584, 0.5
    %v1586 = vmul.f32 %v1580, %v1476
    %v1587 = vmul.f32 %v1576, %v1581
    %v1588 = vadd.f32 %v1586, %v1587
    %v1589 = vtanh.pop %v1588
    %v1590 = vmul.f32 %v1585, %v1589
    %1591 = vst [vmem:[#allocation6] sm:$0xff] %v1590
    // Predicated region
    $region30: #{tpu_custom_call.1} parent=1 // pred_check
      _
    $region31: #{tpu_custom_call.1} parent=1 // pred_check_branch
      %1593 = sbr.rel (0) target = $region33
    $region32: #{tpu_custom_call.1} parent=1 // pred_region
      %s1595 = ssub.s32 128, 128
      %1596 = vsyncadd [#allocation5], %s1595
      %s1598 = sshll.u32 [#allocation6], 4
      %s1599 = int_to_ptr.vmem [resolvable:$true] %s1598
      %1601 = dma.vmem_to_hbm [thread:$0]  %s1599, 128, %s6, [#allocation5]
    $region33: #{tpu_custom_call.1} parent=1 // pred_fallthru
      _
    // Predicated region
    $region34: #{tpu_custom_call.1} parent=1 // pred_check
      _
    $region35: #{tpu_custom_call.1} parent=1 // pred_check_branch
      %1603 = sbr.rel (0) target = $region37
    $region36: #{tpu_custom_call.1} parent=1 // pred_region
      %1604 = dma.done [#allocation5], 128
    $region37: #{tpu_custom_call.1} parent=1 // pred_fallthru
      _
    %1605 = vsyncpa [#allocation4], 1
    %1606 = vsyncpa [#allocation5], 1

</llo_original>
